<compile_context>
chip_gen: v6e
topology: v6e:2x2x1
jax: 0.10.0
libtpu: 0.0.40
codegen_flags: <defaults>
</compile_context>

<pallas_src>
import functools

import numpy as np
import jax
import jax.numpy as jnp
from jax.experimental import pallas as pl
from jax.experimental.pallas import tpu as pltpu


# ----------------------------- fused Pallas kernel -----------------------------
def _down_block_kernel(x_ref, w_ref, p_ref, *rest, has_mask, neg_slope):
    """One grid step = one batch element.

    x_ref:   (1, H, W, Cin_eff)        NHWC input (+ mask as last channel if present)
    w_ref:   (9*Cin_eff, Cout_eff)     im2col-ordered conv weights (bf16)
    p_ref:   (Hp*Wp, Ho*Wo)            constant 2x2/stride-2 avg-pool matrix (f32)
    out_ref: (1, Hp*Wp, Cout)          pooled LeakyReLU(conv) output
    [mout_ref]: (1, Hp*Wp, 1)          pooled mask-conv output (if has_mask)
    col_ref: (Ho, Wo, 9*Cin_eff)       VMEM im2col scratch
    """
    if has_mask:
        out_ref, mout_ref, col_ref = rest
    else:
        out_ref, col_ref = rest

    ho, wo, _ = col_ref.shape
    cin_eff = x_ref.shape[-1]
    cout = out_ref.shape[-1]
    cout_eff = w_ref.shape[-1]

    # ---- im2col: built once into VMEM scratch (9 shifted window loads) ----
    for dy in range(3):
        for dx in range(3):
            tap = dy * 3 + dx
            col_ref[:, :, tap * cin_eff:(tap + 1) * cin_eff] = (
                x_ref[0, dy:dy + ho, dx:dx + wo, :])

    cols = col_ref[...].reshape(ho * wo, 9 * cin_eff)

    # ---- 3x3 conv (+ folded mask conv) as ONE deep-K MXU matmul, f32 accumulate ----
    acc = jnp.dot(cols.astype(jnp.bfloat16), w_ref[...],
                  preferred_element_type=jnp.float32)            # (Ho*Wo, Cout_eff)

    # ---- LeakyReLU(0.2) on conv channels; identity (slope 1) on the mask channel ----
    if has_mask:
        lane = jax.lax.broadcasted_iota(jnp.int32, (1, cout_eff), 1)
        slope = jnp.where(lane < cout, jnp.float32(neg_slope), jnp.float32(1.0))
    else:
        slope = jnp.float32(neg_slope)
    y = jnp.where(acc > 0, acc, acc * slope)

    # ---- 2x2 stride-2 average pool as a matmul with a constant pooling matrix ----
    pooled = jnp.dot(p_ref[...], y, preferred_element_type=jnp.float32)  # (Hp*Wp, Cout_eff)

    if has_mask:
        out_ref[0] = pooled[:, :cout].astype(out_ref.dtype)
        mout_ref[0] = pooled[:, cout:cout + 1].astype(mout_ref.dtype)
    else:
        out_ref[0] = pooled.astype(out_ref.dtype)


# ----------------------------- wrapper -----------------------------
def down_block_mnet_forward(params, x_nchw, mask_nchw=None, *, neg_slope=0.2):
    """downBlock_mnet.forward.  x: (B, Cin, H, W); mask: (B, 1, H, W) or None.

    Returns (out, mask_out) in NCHW, matching the PyTorch module.
    """
    w_hwio = params["w"]                       # (3, 3, Cin, Cout)
    B, cin, H, W = x_nchw.shape
    cout = w_hwio.shape[-1]
    ho, wo = H - 2, W - 2                      # conv: kernel 3, stride 1, padding 0
    hp, wp = ho // 2, wo // 2                  # avg_pool2d(2) (floor, like PyTorch)
    assert ho > 0 and wo > 0

    has_mask = mask_nchw is not None

    x = jnp.transpose(x_nchw, (0, 2, 3, 1))    # NCHW -> NHWC
    if has_mask:
        m = jnp.transpose(mask_nchw, (0, 2, 3, 1))               # (B, H, W, 1)
        x = jnp.concatenate([x, m], axis=-1)                     # mask = extra channel
        cin_eff, cout_eff = cin + 1, cout + 1
        w_ext = jnp.zeros((3, 3, cin_eff, cout_eff), jnp.float32)
        w_ext = w_ext.at[:, :, :cin, :cout].set(w_hwio)          # conv block
        w_ext = w_ext.at[:, :, cin, cout].set(params["w_mask"])  # mask conv column
    else:
        cin_eff, cout_eff = cin, cout
        w_ext = w_hwio
    w_flat = w_ext.reshape(9 * cin_eff, cout_eff).astype(jnp.bfloat16)

    # Constant 2x2/stride-2 average-pooling matrix (built at trace time).
    pmat = np.zeros((hp * wp, ho * wo), np.float32)
    for ip in range(hp):
        for jp in range(wp):
            r = ip * wp + jp
            for a in range(2):
                for b in range(2):
                    pmat[r, (2 * ip + a) * wo + (2 * jp + b)] = 0.25
    pmat = jnp.asarray(pmat)

    out_shapes = [jax.ShapeDtypeStruct((B, hp * wp, cout), jnp.float32)]
    out_specs = [pl.BlockSpec((1, hp * wp, cout), lambda b: (b, 0, 0))]
    if has_mask:
        out_shapes.append(jax.ShapeDtypeStruct((B, hp * wp, 1), jnp.float32))
        out_specs.append(pl.BlockSpec((1, hp * wp, 1), lambda b: (b, 0, 0)))

    kernel = functools.partial(_down_block_kernel, has_mask=has_mask,
                               neg_slope=neg_slope)

    results = pl.pallas_call(
        kernel,
        out_shape=tuple(out_shapes),
        grid=(B,),
        in_specs=[
            pl.BlockSpec((1, H, W, cin_eff), lambda b: (b, 0, 0, 0)),
            pl.BlockSpec((9 * cin_eff, cout_eff), lambda b: (0, 0)),   # resident weights
            pl.BlockSpec((hp * wp, ho * wo), lambda b: (0, 0)),        # resident pool mat
        ],
        out_specs=tuple(out_specs),
        scratch_shapes=[pltpu.VMEM((ho, wo, 9 * cin_eff), jnp.float32)],
        compiler_params=pltpu.CompilerParams(
            dimension_semantics=("parallel",)),                       # v7x: feed both TCs
    )(x, w_flat, pmat)

    out = jnp.transpose(results[0].reshape(B, hp, wp, cout), (0, 3, 1, 2))
    if not has_mask:
        return out, None
    mask_out = jnp.transpose(results[1].reshape(B, hp, wp, 1), (0, 3, 1, 2))
    return out, mask_out


# ----------------------------- pure-JAX reference -----------------------------
def _avg_pool_2x2_ref(y_nhwc):
    B, H, W, C = y_nhwc.shape
    y = y_nhwc[:, : (H // 2) * 2, : (W // 2) * 2, :]
    y = y.reshape(B, H // 2, 2, W // 2, 2, C)
    return y.mean(axis=(2, 4))


def down_block_mnet_ref(params, x_nchw, mask_nchw=None, *, neg_slope=0.2):
    x = jnp.transpose(x_nchw, (0, 2, 3, 1))
    y = jax.lax.conv_general_dilated(
        x, params["w"], window_strides=(1, 1), padding="VALID",
        dimension_numbers=("NHWC", "HWIO", "NHWC"))
    y = jnp.where(y > 0, y, neg_slope * y)
    y = _avg_pool_2x2_ref(y)
    out = jnp.transpose(y, (0, 3, 1, 2))
    if mask_nchw is None:
        return out, None
    m = jnp.transpose(mask_nchw, (0, 2, 3, 1))
    wm = params["w_mask"].reshape(3, 3, 1, 1)
    my = jax.lax.conv_general_dilated(
        m, wm, window_strides=(1, 1), padding="VALID",
        dimension_numbers=("NHWC", "HWIO", "NHWC"))
    my = _avg_pool_2x2_ref(my)
    return out, jnp.transpose(my, (0, 3, 1, 2))


# ----------------------------- main -----------------------------
if __name__ == "__main__":
    B, CIN, COUT, H, W = 2, 4, 8, 16, 16
    key = jax.random.PRNGKey(0)
    kx, km, kw, kwm = jax.random.split(key, 4)

    x = jax.random.normal(kx, (B, CIN, H, W), jnp.float32)
    mask = jax.random.uniform(km, (B, 1, H, W), jnp.float32)          # N*1*H*W mask
    params = {
        "w": 0.1 * jax.random.normal(kw, (3, 3, CIN, COUT), jnp.float32),   # HWIO
        "w_mask": 0.2 * jax.random.normal(kwm, (3, 3), jnp.float32),
    }

    fwd = jax.jit(down_block_mnet_forward)

    out, mask_out = fwd(params, x, mask)
    out, mask_out = jax.block_until_ready((out, mask_out))

    hp, wp = (H - 2) // 2, (W - 2) // 2
    assert out.shape == (B, COUT, hp, wp), out.shape
    assert mask_out.shape == (B, 1, hp, wp), mask_out.shape

    ref_out, ref_mask = down_block_mnet_ref(params, x, mask)
    assert jnp.allclose(out, ref_out, atol=2e-2, rtol=2e-2), "output mismatch vs reference"
    assert jnp.allclose(mask_out, ref_mask, atol=2e-2, rtol=2e-2), "mask mismatch vs reference"

    # mask=None path (module allows it)
    out2, none_mask = fwd(params, x, None)
    out2 = jax.block_until_ready(out2)
    assert none_mask is None
    ref_out2, _ = down_block_mnet_ref(params, x, None)
    assert jnp.allclose(out2, ref_out2, atol=2e-2, rtol=2e-2), "mask=None output mismatch"

    print("KERNEL_OK")
</pallas_src>

<mosaic_0001>
module attributes {stable_mosaic.version = 11 : i64} {
  func.func @_down_block_kernel(%arg0: i32, %arg1: memref<1x16x16x5xf32, #tpu.memory_space<vmem>>, %arg2: memref<45x9xbf16, #tpu.memory_space<vmem>>, %arg3: memref<49x196xf32, #tpu.memory_space<vmem>>, %arg4: memref<1x49x8xf32, #tpu.memory_space<vmem>>, %arg5: memref<1x49x1xf32, #tpu.memory_space<vmem>>, %arg6: memref<14x14x45xf32, #tpu.memory_space<vmem>>) attributes {dimension_semantics = [#tpu.dimension_semantics<parallel>], iteration_bounds = array<i64: 2>, scalar_prefetch = 0 : i64, scratch_operands = 1 : i64, tpu.core_type = #tpu.core_type<tc>, window_params = [{transform_indices = @transform_0, window_bounds = array<i64: 1, 16, 16, 5>}, {pipeline_mode = #tpu.pipeline_mode<synchronous>, transform_indices = @transform_1, window_bounds = array<i64: 45, 9>}, {pipeline_mode = #tpu.pipeline_mode<synchronous>, transform_indices = @transform_2, window_bounds = array<i64: 49, 196>}, {transform_indices = @transform_3, window_bounds = array<i64: 1, 49, 8>}, {transform_indices = @transform_4, window_bounds = array<i64: 1, 49, 1>}]} {
    %c0 = arith.constant 0 : index
    %c0_0 = arith.constant 0 : index
    %c0_1 = arith.constant 0 : index
    %c0_2 = arith.constant 0 : index
    %0 = vector.load %arg1[%c0, %c0_0, %c0_1, %c0_2] : memref<1x16x16x5xf32, #tpu.memory_space<vmem>>, vector<1x14x14x5xf32>
    %1 = vector.shape_cast %0 : vector<1x14x14x5xf32> to vector<14x14x5xf32>
    %c0_3 = arith.constant 0 : index
    %c0_4 = arith.constant 0 : index
    %c0_5 = arith.constant 0 : index
    %2 = vector.load %arg6[%c0_3, %c0_4, %c0_5] : memref<14x14x45xf32, #tpu.memory_space<vmem>>, vector<14x14x5xf32>
    tpu.vector_store %arg6[%c0_3, %c0_4, %c0_5], %1 {strides = array<i32>} : memref<14x14x45xf32, #tpu.memory_space<vmem>>, vector<14x14x5xf32>,
    %c0_6 = arith.constant 0 : index
    %c0_7 = arith.constant 0 : index
    %c1 = arith.constant 1 : index
    %c0_8 = arith.constant 0 : index
    %3 = vector.load %arg1[%c0_6, %c0_7, %c1, %c0_8] : memref<1x16x16x5xf32, #tpu.memory_space<vmem>>, vector<1x14x14x5xf32>
    %4 = vector.shape_cast %3 : vector<1x14x14x5xf32> to vector<14x14x5xf32>
    %c0_9 = arith.constant 0 : index
    %c0_10 = arith.constant 0 : index
    %c5 = arith.constant 5 : index
    %5 = vector.load %arg6[%c0_9, %c0_10, %c5] : memref<14x14x45xf32, #tpu.memory_space<vmem>>, vector<14x14x5xf32>
    tpu.vector_store %arg6[%c0_9, %c0_10, %c5], %4 {strides = array<i32>} : memref<14x14x45xf32, #tpu.memory_space<vmem>>, vector<14x14x5xf32>,
    %c0_11 = arith.constant 0 : index
    %c0_12 = arith.constant 0 : index
    %c2 = arith.constant 2 : index
    %c0_13 = arith.constant 0 : index
    %6 = vector.load %arg1[%c0_11, %c0_12, %c2, %c0_13] : memref<1x16x16x5xf32, #tpu.memory_space<vmem>>, vector<1x14x14x5xf32>
    %7 = vector.shape_cast %6 : vector<1x14x14x5xf32> to vector<14x14x5xf32>
    %c0_14 = arith.constant 0 : index
    %c0_15 = arith.constant 0 : index
    %c10 = arith.constant 10 : index
    %8 = vector.load %arg6[%c0_14, %c0_15, %c10] : memref<14x14x45xf32, #tpu.memory_space<vmem>>, vector<14x14x5xf32>
    tpu.vector_store %arg6[%c0_14, %c0_15, %c10], %7 {strides = array<i32>} : memref<14x14x45xf32, #tpu.memory_space<vmem>>, vector<14x14x5xf32>,
    %c0_16 = arith.constant 0 : index
    %c1_17 = arith.constant 1 : index
    %c0_18 = arith.constant 0 : index
    %c0_19 = arith.constant 0 : index
    %9 = vector.load %arg1[%c0_16, %c1_17, %c0_18, %c0_19] : memref<1x16x16x5xf32, #tpu.memory_space<vmem>>, vector<1x14x14x5xf32>
    %10 = vector.shape_cast %9 : vector<1x14x14x5xf32> to vector<14x14x5xf32>
    %c0_20 = arith.constant 0 : index
    %c0_21 = arith.constant 0 : index
    %c15 = arith.constant 15 : index
    %11 = vector.load %arg6[%c0_20, %c0_21, %c15] : memref<14x14x45xf32, #tpu.memory_space<vmem>>, vector<14x14x5xf32>
    tpu.vector_store %arg6[%c0_20, %c0_21, %c15], %10 {strides = array<i32>} : memref<14x14x45xf32, #tpu.memory_space<vmem>>, vector<14x14x5xf32>,
    %c0_22 = arith.constant 0 : index
    %c1_23 = arith.constant 1 : index
    %c1_24 = arith.constant 1 : index
    %c0_25 = arith.constant 0 : index
    %12 = vector.load %arg1[%c0_22, %c1_23, %c1_24, %c0_25] : memref<1x16x16x5xf32, #tpu.memory_space<vmem>>, vector<1x14x14x5xf32>
    %13 = vector.shape_cast %12 : vector<1x14x14x5xf32> to vector<14x14x5xf32>
    %c0_26 = arith.constant 0 : index
    %c0_27 = arith.constant 0 : index
    %c20 = arith.constant 20 : index
    %14 = vector.load %arg6[%c0_26, %c0_27, %c20] : memref<14x14x45xf32, #tpu.memory_space<vmem>>, vector<14x14x5xf32>
    tpu.vector_store %arg6[%c0_26, %c0_27, %c20], %13 {strides = array<i32>} : memref<14x14x45xf32, #tpu.memory_space<vmem>>, vector<14x14x5xf32>,
    %c0_28 = arith.constant 0 : index
    %c1_29 = arith.constant 1 : index
    %c2_30 = arith.constant 2 : index
    %c0_31 = arith.constant 0 : index
    %15 = vector.load %arg1[%c0_28, %c1_29, %c2_30, %c0_31] : memref<1x16x16x5xf32, #tpu.memory_space<vmem>>, vector<1x14x14x5xf32>
    %16 = vector.shape_cast %15 : vector<1x14x14x5xf32> to vector<14x14x5xf32>
    %c0_32 = arith.constant 0 : index
    %c0_33 = arith.constant 0 : index
    %c25 = arith.constant 25 : index
    %17 = vector.load %arg6[%c0_32, %c0_33, %c25] : memref<14x14x45xf32, #tpu.memory_space<vmem>>, vector<14x14x5xf32>
    tpu.vector_store %arg6[%c0_32, %c0_33, %c25], %16 {strides = array<i32>} : memref<14x14x45xf32, #tpu.memory_space<vmem>>, vector<14x14x5xf32>,
    %c0_34 = arith.constant 0 : index
    %c2_35 = arith.constant 2 : index
    %c0_36 = arith.constant 0 : index
    %c0_37 = arith.constant 0 : index
    %18 = vector.load %arg1[%c0_34, %c2_35, %c0_36, %c0_37] : memref<1x16x16x5xf32, #tpu.memory_space<vmem>>, vector<1x14x14x5xf32>
    %19 = vector.shape_cast %18 : vector<1x14x14x5xf32> to vector<14x14x5xf32>
    %c0_38 = arith.constant 0 : index
    %c0_39 = arith.constant 0 : index
    %c30 = arith.constant 30 : index
    %20 = vector.load %arg6[%c0_38, %c0_39, %c30] : memref<14x14x45xf32, #tpu.memory_space<vmem>>, vector<14x14x5xf32>
    tpu.vector_store %arg6[%c0_38, %c0_39, %c30], %19 {strides = array<i32>} : memref<14x14x45xf32, #tpu.memory_space<vmem>>, vector<14x14x5xf32>,
    %c0_40 = arith.constant 0 : index
    %c2_41 = arith.constant 2 : index
    %c1_42 = arith.constant 1 : index
    %c0_43 = arith.constant 0 : index
    %21 = vector.load %arg1[%c0_40, %c2_41, %c1_42, %c0_43] : memref<1x16x16x5xf32, #tpu.memory_space<vmem>>, vector<1x14x14x5xf32>
    %22 = vector.shape_cast %21 : vector<1x14x14x5xf32> to vector<14x14x5xf32>
    %c0_44 = arith.constant 0 : index
    %c0_45 = arith.constant 0 : index
    %c35 = arith.constant 35 : index
    %23 = vector.load %arg6[%c0_44, %c0_45, %c35] : memref<14x14x45xf32, #tpu.memory_space<vmem>>, vector<14x14x5xf32>
    tpu.vector_store %arg6[%c0_44, %c0_45, %c35], %22 {strides = array<i32>} : memref<14x14x45xf32, #tpu.memory_space<vmem>>, vector<14x14x5xf32>,
    %c0_46 = arith.constant 0 : index
    %c2_47 = arith.constant 2 : index
    %c2_48 = arith.constant 2 : index
    %c0_49 = arith.constant 0 : index
    %24 = vector.load %arg1[%c0_46, %c2_47, %c2_48, %c0_49] : memref<1x16x16x5xf32, #tpu.memory_space<vmem>>, vector<1x14x14x5xf32>
    %25 = vector.shape_cast %24 : vector<1x14x14x5xf32> to vector<14x14x5xf32>
    %c0_50 = arith.constant 0 : index
    %c0_51 = arith.constant 0 : index
    %c40 = arith.constant 40 : index
    %26 = vector.load %arg6[%c0_50, %c0_51, %c40] : memref<14x14x45xf32, #tpu.memory_space<vmem>>, vector<14x14x5xf32>
    tpu.vector_store %arg6[%c0_50, %c0_51, %c40], %25 {strides = array<i32>} : memref<14x14x45xf32, #tpu.memory_space<vmem>>, vector<14x14x5xf32>,
    %c0_52 = arith.constant 0 : index
    %c0_53 = arith.constant 0 : index
    %c0_54 = arith.constant 0 : index
    %27 = vector.load %arg6[%c0_52, %c0_53, %c0_54] : memref<14x14x45xf32, #tpu.memory_space<vmem>>, vector<14x14x45xf32>
    %28 = vector.shape_cast %27 : vector<14x14x45xf32> to vector<196x45xf32>
    %29 = arith.truncf %28 : vector<196x45xf32> to vector<196x45xbf16>
    %c0_55 = arith.constant 0 : index
    %c0_56 = arith.constant 0 : index
    %30 = vector.load %arg2[%c0_55, %c0_56] : memref<45x9xbf16, #tpu.memory_space<vmem>>, vector<45x9xbf16>
    %cst = arith.constant dense<0.000000e+00> : vector<196x9xf32>
    %31 = tpu.matmul %29, %30, %cst {dimension_numbers = #tpu.dot_dimension_numbers<[1], [0], [0], [1], [0, 0, 1, 1], [], []>} : vector<196x45xbf16>, vector<45x9xbf16>, vector<196x9xf32> -> vector<196x9xf32>
    %32 = tpu.iota {dimensions = array<i32: 1>} : vector<1x9xi32>
    %c8_i32 = arith.constant 8 : i32
    %33 = vector.broadcast %c8_i32 : i32 to vector<1x9xi32>
    %34 = arith.cmpi slt, %32, %33 : vector<1x9xi32>
    %cst_57 = arith.constant 2.000000e-01 : f32
    %cst_58 = arith.constant 1.000000e+00 : f32
    %35 = vector.broadcast %cst_57 : f32 to vector<1x9xf32>
    %36 = vector.broadcast %cst_58 : f32 to vector<1x9xf32>
    %37 = arith.select %34, %35, %36 : vector<1x9xi1>, vector<1x9xf32>
    %cst_59 = arith.constant 0.000000e+00 : f32
    %38 = vector.broadcast %cst_59 : f32 to vector<196x9xf32>
    %39 = arith.cmpf ogt, %31, %38 : vector<196x9xf32>
    %40 = vector.broadcast %37 : vector<1x9xf32> to vector<196x9xf32>
    %41 = arith.mulf %31, %40 : vector<196x9xf32>
    %42 = arith.select %39, %31, %41 : vector<196x9xi1>, vector<196x9xf32>
    %c0_60 = arith.constant 0 : index
    %c0_61 = arith.constant 0 : index
    %43 = vector.load %arg3[%c0_60, %c0_61] : memref<49x196xf32, #tpu.memory_space<vmem>>, vector<49x196xf32>
    %cst_62 = arith.constant dense<0.000000e+00> : vector<49x9xf32>
    %44 = tpu.matmul %43, %42, %cst_62 {dimension_numbers = #tpu.dot_dimension_numbers<[1], [0], [0], [1], [0, 0, 1, 1], [], []>} : vector<49x196xf32>, vector<196x9xf32>, vector<49x9xf32> -> vector<49x9xf32>
    %45 = vector.extract_strided_slice %44 {offsets = [0, 0], sizes = [49, 8], strides = [1, 1]} : vector<49x9xf32> to vector<49x8xf32>
    %c0_63 = arith.constant 0 : index
    %c0_64 = arith.constant 0 : index
    %c0_65 = arith.constant 0 : index
    %46 = vector.load %arg4[%c0_63, %c0_64, %c0_65] : memref<1x49x8xf32, #tpu.memory_space<vmem>>, vector<1x49x8xf32>
    %47 = vector.shape_cast %46 : vector<1x49x8xf32> to vector<49x8xf32>
    %48 = vector.shape_cast %45 : vector<49x8xf32> to vector<1x49x8xf32>
    tpu.vector_store %arg4[%c0_63, %c0_64, %c0_65], %48 {strides = array<i32>} : memref<1x49x8xf32, #tpu.memory_space<vmem>>, vector<1x49x8xf32>,
    %49 = vector.extract_strided_slice %44 {offsets = [0, 8], sizes = [49, 1], strides = [1, 1]} : vector<49x9xf32> to vector<49x1xf32>
    %c0_66 = arith.constant 0 : index
    %c0_67 = arith.constant 0 : index
    %c0_68 = arith.constant 0 : index
    %50 = vector.load %arg5[%c0_66, %c0_67, %c0_68] : memref<1x49x1xf32, #tpu.memory_space<vmem>>, vector<1x49x1xf32>
    %51 = vector.shape_cast %50 : vector<1x49x1xf32> to vector<49x1xf32>
    %52 = vector.shape_cast %49 : vector<49x1xf32> to vector<1x49x1xf32>
    tpu.vector_store %arg5[%c0_66, %c0_67, %c0_68], %52 {strides = array<i32>} : memref<1x49x1xf32, #tpu.memory_space<vmem>>, vector<1x49x1xf32>,
    return
  }
  func.func @transform_0(%arg0: i32) -> (i32, i32, i32, i32) {
    %c0_i32 = arith.constant 0 : i32
    %c0_i32_0 = arith.constant 0 : i32
    %c0_i32_1 = arith.constant 0 : i32
    %c0_i32_2 = arith.constant 0 : i32
    return %arg0, %c0_i32, %c0_i32_0, %c0_i32_1 : i32, i32, i32, i32
  }
  func.func @transform_1(%arg0: i32) -> (i32, i32) {
    %c0_i32 = arith.constant 0 : i32
    %c0_i32_0 = arith.constant 0 : i32
    %c0_i32_1 = arith.constant 0 : i32
    return %c0_i32, %c0_i32_0 : i32, i32
  }
  func.func @transform_2(%arg0: i32) -> (i32, i32) {
    %c0_i32 = arith.constant 0 : i32
    %c0_i32_0 = arith.constant 0 : i32
    %c0_i32_1 = arith.constant 0 : i32
    return %c0_i32, %c0_i32_0 : i32, i32
  }
  func.func @transform_3(%arg0: i32) -> (i32, i32, i32) {
    %c0_i32 = arith.constant 0 : i32
    %c0_i32_0 = arith.constant 0 : i32
    %c0_i32_1 = arith.constant 0 : i32
    return %arg0, %c0_i32, %c0_i32_0 : i32, i32, i32
  }
  func.func @transform_4(%arg0: i32) -> (i32, i32, i32) {
    %c0_i32 = arith.constant 0 : i32
    %c0_i32_0 = arith.constant 0 : i32
    %c0_i32_1 = arith.constant 0 : i32
    return %arg0, %c0_i32, %c0_i32_0 : i32, i32, i32
  }
}

</mosaic_0001>

<llo_original>
// kernel: down_block_mnet_forward.1
$region0: #{down_block_mnet_forward.1}
  #allocation0 [shape = 'u32[]', space=smem, size = 0x4, offset = 0x4, fixed_abs, tag = 'smem constant byte address 0x4 - core index']
  #allocation1 [shape = 'u32[144,128]{1,0:T(1,128)}', space=vmem, size = 0x12000, scoped, tag = 'internal scratch']
  #allocation2 [shape = 'f32[14,14,45]{2,1,0:T(8,128)}', space=vmem, size = 0x1c000, scoped, tag = 'scratch operand']
  %s0 = inlined_call_operand.vmem [shape: f32[2,16,16,5], index: 0, kind: input, shape index: {}]
  %s1 = inlined_call_operand.vmem [shape: bf16[45,9], index: 1, kind: input, shape index: {}]
  %s2 = inlined_call_operand.vmem [shape: f32[49,196], index: 2, kind: input, shape index: {}]
  %s3 = inlined_call_operand.vmem [shape: f32[2,49,8], index: 3, kind: output, shape index: {0}]
  %s4 = inlined_call_operand.vmem [shape: f32[2,49,1], index: 4, kind: output, shape index: {1}]
  %5 = xla_tuple %s3, %s4
  %s6 = sld [smem:[#allocation0]]
  $region53: #{down_block_mnet_forward.1} parent=0
    _
  %s8 = ssub.s32 1, %s6
  %s9 = scalar_select 0, %s8, %s6
  loop: start=0, step=1, limit=4
  $region2: #{down_block_mnet_forward.1} parent=0 // loop_pre_header
    _
  $region3: #{down_block_mnet_forward.1} parent=0 // loop_header
    %s11 = sphi 0, %s15
    %p12 = scmp.ge.s32.totalorder %s11, 4
    %s21 = sphi 0, %s23
    %s24 = sphi 0, %s21
    %s25 = sphi 0, %s24
    %s41 = sphi 0, %s25
    %s45 = sphi 0, %s45
    %s47 = sphi 0, %s45
    %s48 = sphi 0, %s47
    %s62 = sphi 0, %s48
    %s66 = sphi 0, %s66
    %s68 = sphi 0, %s66
    %s69 = sphi 0, %s68
    %s83 = sphi 0, %s69
    %s89 = sphi 0, %s91
    %s92 = sphi 0, %s89
    %s93 = sphi 0, %s92
    %s109 = sphi 0, %s93
    %s115 = sphi 0, %s117
    %s118 = sphi 0, %s115
    %s119 = sphi 0, %s118
    %s135 = sphi 0, %s119
  $region4: #{down_block_mnet_forward.1} parent=0 // loop_header_branch
    %14 = sbr.rel (%p12) target = $region8
  $region5: #{down_block_mnet_forward.1} parent=0 // loop_body
    %s16 = ssub.s32 %s11, 1
    %s17 = ssub.s32 %s11, 2
    %s18 = sadd.s32 %s11, 1
    %s19 = ssub.s32 %s11, %s18
    %p20 = scmp.eq.s32.totalorder %s19, 0
    %s22 = sadd.s32 %s21, 1
    %s23 = scalar_select %p20, %s21, %s22
    %p26 = pneg %p20
    %p27 = scmp.eq.s32.totalorder %s11, 1
    %p28 = por %p26, %p27
    %p29 = scmp.ne.s32.totalorder %s21, %s24
    %p30 = scmp.eq.s32.totalorder %s11, 0
    %p31 = por %p29, %p30
    %p32 = scmp.ne.s32.totalorder %s21, %s24
    %p33 = scmp.eq.s32.totalorder %s16, 1
    %p34 = por %p32, %p33
    %p35 = scmp.ne.s32.totalorder %s24, %s25
    %p36 = scmp.eq.s32.totalorder %s16, 0
    %p37 = por %p35, %p36
    %p38 = scmp.ne.s32.totalorder %s24, %s25
    %p39 = scmp.eq.s32.totalorder %s17, 1
    %p40 = por %p38, %p39
    %p42 = scmp.ne.s32.totalorder %s25, %s41
    %p43 = scmp.eq.s32.totalorder %s17, 0
    %p44 = por %p42, %p43
    %s46 = sadd.s32 %s45, 1
    %p49 = scmp.eq.s32.totalorder %s11, 1
    %p50 = scmp.ne.s32.totalorder %s45, %s47
    %p51 = scmp.eq.s32.totalorder %s11, 0
    %p52 = por %p50, %p51
    %p53 = scmp.ne.s32.totalorder %s45, %s47
    %p54 = scmp.eq.s32.totalorder %s16, 1
    %p55 = por %p53, %p54
    %p56 = scmp.ne.s32.totalorder %s47, %s48
    %p57 = scmp.eq.s32.totalorder %s16, 0
    %p58 = por %p56, %p57
    %p59 = scmp.ne.s32.totalorder %s47, %s48
    %p60 = scmp.eq.s32.totalorder %s17, 1
    %p61 = por %p59, %p60
    %p63 = scmp.ne.s32.totalorder %s48, %s62
    %p64 = scmp.eq.s32.totalorder %s17, 0
    %p65 = por %p63, %p64
    %s67 = sadd.s32 %s66, 1
    %p70 = scmp.eq.s32.totalorder %s11, 1
    %p71 = scmp.ne.s32.totalorder %s66, %s68
    %p72 = scmp.eq.s32.totalorder %s11, 0
    %p73 = por %p71, %p72
    %p74 = scmp.ne.s32.totalorder %s66, %s68
    %p75 = scmp.eq.s32.totalorder %s16, 1
    %p76 = por %p74, %p75
    %p77 = scmp.ne.s32.totalorder %s68, %s69
    %p78 = scmp.eq.s32.totalorder %s16, 0
    %p79 = por %p77, %p78
    %p80 = scmp.ne.s32.totalorder %s68, %s69
    %p81 = scmp.eq.s32.totalorder %s17, 1
    %p82 = por %p80, %p81
    %p84 = scmp.ne.s32.totalorder %s69, %s83
    %p85 = scmp.eq.s32.totalorder %s17, 0
    %p86 = por %p84, %p85
    %s87 = ssub.s32 %s11, %s18
    %p88 = scmp.eq.s32.totalorder %s87, 0
    %s90 = sadd.s32 %s89, 1
    %s91 = scalar_select %p88, %s89, %s90
    %p94 = pneg %p88
    %p95 = scmp.eq.s32.totalorder %s11, 1
    %p96 = por %p94, %p95
    %p97 = scmp.ne.s32.totalorder %s89, %s92
    %p98 = scmp.eq.s32.totalorder %s11, 0
    %p99 = por %p97, %p98
    %p100 = scmp.ne.s32.totalorder %s89, %s92
    %p101 = scmp.eq.s32.totalorder %s16, 1
    %p102 = por %p100, %p101
    %p103 = scmp.ne.s32.totalorder %s92, %s93
    %p104 = scmp.eq.s32.totalorder %s16, 0
    %p105 = por %p103, %p104
    %p106 = scmp.ne.s32.totalorder %s92, %s93
    %p107 = scmp.eq.s32.totalorder %s17, 1
    %p108 = por %p106, %p107
    %p110 = scmp.ne.s32.totalorder %s93, %s109
    %p111 = scmp.eq.s32.totalorder %s17, 0
    %p112 = por %p110, %p111
    %s113 = ssub.s32 %s11, %s18
    %p114 = scmp.eq.s32.totalorder %s113, 0
    %s116 = sadd.s32 %s115, 1
    %s117 = scalar_select %p114, %s115, %s116
    %p120 = pneg %p114
    %p121 = scmp.eq.s32.totalorder %s11, 1
    %p122 = por %p120, %p121
    %p123 = scmp.ne.s32.totalorder %s115, %s118
    %p124 = scmp.eq.s32.totalorder %s11, 0
    %p125 = por %p123, %p124
    %p126 = scmp.ne.s32.totalorder %s115, %s118
    %p127 = scmp.eq.s32.totalorder %s16, 1
    %p128 = por %p126, %p127
    %p129 = scmp.ne.s32.totalorder %s118, %s119
    %p130 = scmp.eq.s32.totalorder %s16, 0
    %p131 = por %p129, %p130
    %p132 = scmp.ne.s32.totalorder %s118, %s119
    %p133 = scmp.eq.s32.totalorder %s17, 1
    %p134 = por %p132, %p133
    %p136 = scmp.ne.s32.totalorder %s119, %s135
    %p137 = scmp.eq.s32.totalorder %s17, 0
    %p138 = por %p136, %p137
    %p139 = scmp.le.s32.totalorder 1, %s11
    %p140 = scmp.lt.s32.totalorder %s11, 3
    %p141 = pnand %p139, %p140
    %p142 = pneg %p141
    // Predicated region
    $region9: #{down_block_mnet_forward.1} parent=5 // pred_check
      _
    $region10: #{down_block_mnet_forward.1} parent=5 // pred_check_branch
      %144 = sbr.rel (%p141) target = $region12
    $region11: #{down_block_mnet_forward.1} parent=5 // pred_region
      %s145 = ssub.s32 %s11, 1
      // Predicated region
      $region13: #{down_block_mnet_forward.1} parent=11 // pred_check
        %p146 = pneg %p58
      $region14: #{down_block_mnet_forward.1} parent=11 // pred_check_branch
        %148 = sbr.rel (%p146) target = $region16
      $region15: #{down_block_mnet_forward.1} parent=11 // pred_region
        _
      $region16: #{down_block_mnet_forward.1} parent=11 // pred_fallthru
        _
      // Predicated region
      $region17: #{down_block_mnet_forward.1} parent=11 // pred_check
        %p149 = pneg %p79
      $region18: #{down_block_mnet_forward.1} parent=11 // pred_check_branch
        %151 = sbr.rel (%p149) target = $region20
      $region19: #{down_block_mnet_forward.1} parent=11 // pred_region
        _
      $region20: #{down_block_mnet_forward.1} parent=11 // pred_fallthru
        _
    $region12: #{down_block_mnet_forward.1} parent=5 // pred_fallthru
      _
    %p152 = scmp.lt.s32.totalorder %s11, 2
    // Predicated region
    $region21: #{down_block_mnet_forward.1} parent=5 // pred_check
      %p153 = pneg %p152
    $region22: #{down_block_mnet_forward.1} parent=5 // pred_check_branch
      %155 = sbr.rel (%p153) target = $region24
    $region23: #{down_block_mnet_forward.1} parent=5 // pred_region
      // Predicated region
      $region25: #{down_block_mnet_forward.1} parent=23 // pred_check
        %p156 = pneg %p31
      $region26: #{down_block_mnet_forward.1} parent=23 // pred_check_branch
        %158 = sbr.rel (%p156) target = $region28
      $region27: #{down_block_mnet_forward.1} parent=23 // pred_region
        %p159 = scmp.lt.s32.totalorder %s11, 1
        %s160 = scalar_select %p159, %s11, 1
        %s161 = smul.addr %s160, 32
        %s162 = smul.addr %s161, 8
        %s163 = scalar_lea.vmem %s0, %s162
      $region28: #{down_block_mnet_forward.1} parent=23 // pred_fallthru
        _
    $region24: #{down_block_mnet_forward.1} parent=5 // pred_fallthru
      _
    %p164 = scmp.le.s32.totalorder 1, %s11
    %p165 = scmp.lt.s32.totalorder %s11, 3
    %p166 = pnand %p164, %p165
    %p167 = pneg %p166
    // Predicated region
    $region29: #{down_block_mnet_forward.1} parent=5 // pred_check
      _
    $region30: #{down_block_mnet_forward.1} parent=5 // pred_check_branch
      %169 = sbr.rel (%p166) target = $region32
    $region31: #{down_block_mnet_forward.1} parent=5 // pred_region
      %s170 = ssub.s32 %s11, 1
      %p171 = scmp.lt.s32.totalorder %s16, 1
      %s172 = scalar_select %p171, %s16, 1
      %s173 = smul.addr %s172, 32
      %s174 = smul.addr %s173, 8
      %s175 = scalar_lea.vmem %s0, %s174
      %p176 = pneg %p37
      %p177 = pneg %p34
      %p178 = pneg %p58
      %p179 = pneg %p55
      %p180 = pneg %p79
      %p181 = pneg %p76
      %p182 = pneg %p105
      %p183 = pneg %p102
      %p184 = scmp.lt.s32.totalorder %s16, 1
      %s185 = scalar_select %p184, %s16, 1
      %s186 = smul.addr %s185, 7
      %s187 = smul.addr %s186, 8
      %s188 = scalar_lea.vmem %s3, %s187
      %p189 = pneg %p131
      %p190 = pneg %p128
      %p191 = scmp.lt.s32.totalorder %s16, 1
      %s192 = scalar_select %p191, %s16, 1
      %s193 = smul.addr %s192, 7
      %s194 = smul.addr %s193, 8
      %s195 = scalar_lea.vmem %s4, %s194
      %p196 = scmp.lt.s32.totalorder %s16, 1
      %s197 = scalar_select %p196, %s16, 1
      %s198 = smul.addr %s197, 32
      %s199 = smul.addr %s198, 8
      %s200 = scalar_lea.vmem %s0, %s199
      %p201 = scmp.lt.s32.totalorder %s16, 1
      %s202 = scalar_select %p201, %s16, 1
      %s203 = smul.addr %s202, 7
      %s204 = smul.addr %s203, 8
      %s205 = scalar_lea.vmem %s3, %s204
      %p206 = scmp.lt.s32.totalorder %s16, 1
      %s207 = scalar_select %p206, %s16, 1
      %s208 = smul.addr %s207, 7
      %s209 = smul.addr %s208, 8
      %s210 = scalar_lea.vmem %s4, %s209
      %v212 = vld [vmem:[%s200] sm:$0xff]
      %v213 = vld [vmem:[%s200 + $0x8] sm:$0x3f]
      %v214 = vld [vmem:[%s200 + $0x10] sm:$0xff]
      %v215 = vld [vmem:[%s200 + $0x18] sm:$0x3f]
      %v216 = vld [vmem:[%s200 + $0x20] sm:$0xff]
      %v217 = vld [vmem:[%s200 + $0x28] sm:$0x3f]
      %v218 = vld [vmem:[%s200 + $0x30] sm:$0xff]
      %v219 = vld [vmem:[%s200 + $0x38] sm:$0x3f]
      %v220 = vld [vmem:[%s200 + $0x40] sm:$0xff]
      %v221 = vld [vmem:[%s200 + $0x48] sm:$0x3f]
      %v222 = vld [vmem:[%s200 + $0x50] sm:$0xff]
      %v223 = vld [vmem:[%s200 + $0x58] sm:$0x3f]
      %v224 = vld [vmem:[%s200 + $0x60] sm:$0xff]
      %v225 = vld [vmem:[%s200 + $0x68] sm:$0x3f]
      %v226 = vld [vmem:[%s200 + $0x70] sm:$0xff]
      %v227 = vld [vmem:[%s200 + $0x78] sm:$0x3f]
      %v228 = vld [vmem:[%s200 + $0x80] sm:$0xff]
      %v229 = vld [vmem:[%s200 + $0x88] sm:$0x3f]
      %v230 = vld [vmem:[%s200 + $0x90] sm:$0xff]
      %v231 = vld [vmem:[%s200 + $0x98] sm:$0x3f]
      %v232 = vld [vmem:[%s200 + $0xa0] sm:$0xff]
      %v233 = vld [vmem:[%s200 + $0xa8] sm:$0x3f]
      %v234 = vld [vmem:[%s200 + $0xb0] sm:$0xff]
      %v235 = vld [vmem:[%s200 + $0xb8] sm:$0x3f]
      %v236 = vld [vmem:[%s200 + $0xc0] sm:$0xff]
      %v237 = vld [vmem:[%s200 + $0xc8] sm:$0x3f]
      %v238 = vld [vmem:[%s200 + $0xd0] sm:$0xff]
      %v239 = vld [vmem:[%s200 + $0xd8] sm:$0x3f]
      %vm240 = vcmask 39936
      %241 = vst.msk [vmem:[#allocation2] sm:$0xff] %vm240, %v212
      %vm242 = vcmask 37888
      %243 = vst.msk [vmem:[#allocation2 + $0x8] sm:$0x3f] %vm242, %v213
      %244 = vst.msk [vmem:[#allocation2 + $0x10] sm:$0xff] %vm240, %v214
      %245 = vst.msk [vmem:[#allocation2 + $0x18] sm:$0x3f] %vm242, %v215
      %246 = vst.msk [vmem:[#allocation2 + $0x20] sm:$0xff] %vm240, %v216
      %247 = vst.msk [vmem:[#allocation2 + $0x28] sm:$0x3f] %vm242, %v217
      %248 = vst.msk [vmem:[#allocation2 + $0x30] sm:$0xff] %vm240, %v218
      %249 = vst.msk [vmem:[#allocation2 + $0x38] sm:$0x3f] %vm242, %v219
      %250 = vst.msk [vmem:[#allocation2 + $0x40] sm:$0xff] %vm240, %v220
      %251 = vst.msk [vmem:[#allocation2 + $0x48] sm:$0x3f] %vm242, %v221
      %252 = vst.msk [vmem:[#allocation2 + $0x50] sm:$0xff] %vm240, %v222
      %253 = vst.msk [vmem:[#allocation2 + $0x58] sm:$0x3f] %vm242, %v223
      %254 = vst.msk [vmem:[#allocation2 + $0x60] sm:$0xff] %vm240, %v224
      %255 = vst.msk [vmem:[#allocation2 + $0x68] sm:$0x3f] %vm242, %v225
      %256 = vst.msk [vmem:[#allocation2 + $0x70] sm:$0xff] %vm240, %v226
      %257 = vst.msk [vmem:[#allocation2 + $0x78] sm:$0x3f] %vm242, %v227
      %258 = vst.msk [vmem:[#allocation2 + $0x80] sm:$0xff] %vm240, %v228
      %259 = vst.msk [vmem:[#allocation2 + $0x88] sm:$0x3f] %vm242, %v229
      %260 = vst.msk [vmem:[#allocation2 + $0x90] sm:$0xff] %vm240, %v230
      %261 = vst.msk [vmem:[#allocation2 + $0x98] sm:$0x3f] %vm242, %v231
      %262 = vst.msk [vmem:[#allocation2 + $0xa0] sm:$0xff] %vm240, %v232
      %263 = vst.msk [vmem:[#allocation2 + $0xa8] sm:$0x3f] %vm242, %v233
      %264 = vst.msk [vmem:[#allocation2 + $0xb0] sm:$0xff] %vm240, %v234
      %265 = vst.msk [vmem:[#allocation2 + $0xb8] sm:$0x3f] %vm242, %v235
      %266 = vst.msk [vmem:[#allocation2 + $0xc0] sm:$0xff] %vm240, %v236
      %267 = vst.msk [vmem:[#allocation2 + $0xc8] sm:$0x3f] %vm242, %v237
      %268 = vst.msk [vmem:[#allocation2 + $0xd0] sm:$0xff] %vm240, %v238
      %269 = vst.msk [vmem:[#allocation2 + $0xd8] sm:$0x3f] %vm242, %v239
      %v270 = vld [vmem:[%s200 + $0x1] sm:$0xff]
      %v271 = vld [vmem:[%s200 + $0x9] sm:$0x3f]
      %v272 = vld [vmem:[%s200 + $0x11] sm:$0xff]
      %v273 = vld [vmem:[%s200 + $0x19] sm:$0x3f]
      %v274 = vld [vmem:[%s200 + $0x21] sm:$0xff]
      %v275 = vld [vmem:[%s200 + $0x29] sm:$0x3f]
      %v276 = vld [vmem:[%s200 + $0x31] sm:$0xff]
      %v277 = vld [vmem:[%s200 + $0x39] sm:$0x3f]
      %v278 = vld [vmem:[%s200 + $0x41] sm:$0xff]
      %v279 = vld [vmem:[%s200 + $0x49] sm:$0x3f]
      %v280 = vld [vmem:[%s200 + $0x51] sm:$0xff]
      %v281 = vld [vmem:[%s200 + $0x59] sm:$0x3f]
      %v282 = vld [vmem:[%s200 + $0x61] sm:$0xff]
      %v283 = vld [vmem:[%s200 + $0x69] sm:$0x3f]
      %v284 = vld [vmem:[%s200 + $0x71] sm:$0xff]
      %v285 = vld [vmem:[%s200 + $0x79] sm:$0x3f]
      %v286 = vld [vmem:[%s200 + $0x81] sm:$0xff]
      %v287 = vld [vmem:[%s200 + $0x89] sm:$0x3f]
      %v288 = vld [vmem:[%s200 + $0x91] sm:$0xff]
      %v289 = vld [vmem:[%s200 + $0x99] sm:$0x3f]
      %v290 = vld [vmem:[%s200 + $0xa1] sm:$0xff]
      %v291 = vld [vmem:[%s200 + $0xa9] sm:$0x3f]
      %v292 = vld [vmem:[%s200 + $0xb1] sm:$0xff]
      %v293 = vld [vmem:[%s200 + $0xb9] sm:$0x3f]
      %v294 = vld [vmem:[%s200 + $0xc1] sm:$0xff]
      %v295 = vld [vmem:[%s200 + $0xc9] sm:$0x3f]
      %v296 = vld [vmem:[%s200 + $0xd1] sm:$0xff]
      %v297 = vld [vmem:[%s200 + $0xd9] sm:$0x3f]
      %326 = vrot.lane.b32.xlu0 %v270, 5
      %v327 = vpop.permute.xlu0 %326
      %328 = vrot.lane.b32.xlu0 %v271, 5
      %v329 = vpop.permute.xlu0 %328
      %330 = vrot.lane.b32.xlu0 %v272, 5
      %v331 = vpop.permute.xlu0 %330
      %332 = vrot.lane.b32.xlu0 %v273, 5
      %v333 = vpop.permute.xlu0 %332
      %334 = vrot.lane.b32.xlu0 %v274, 5
      %v335 = vpop.permute.xlu0 %334
      %336 = vrot.lane.b32.xlu0 %v275, 5
      %v337 = vpop.permute.xlu0 %336
      %338 = vrot.lane.b32.xlu0 %v276, 5
      %v339 = vpop.permute.xlu0 %338
      %340 = vrot.lane.b32.xlu0 %v277, 5
      %v341 = vpop.permute.xlu0 %340
      %342 = vrot.lane.b32.xlu0 %v278, 5
      %v343 = vpop.permute.xlu0 %342
      %344 = vrot.lane.b32.xlu0 %v279, 5
      %v345 = vpop.permute.xlu0 %344
      %346 = vrot.lane.b32.xlu0 %v280, 5
      %v347 = vpop.permute.xlu0 %346
      %348 = vrot.lane.b32.xlu0 %v281, 5
      %v349 = vpop.permute.xlu0 %348
      %350 = vrot.lane.b32.xlu0 %v282, 5
      %v351 = vpop.permute.xlu0 %350
      %352 = vrot.lane.b32.xlu0 %v283, 5
      %v353 = vpop.permute.xlu0 %352
      %354 = vrot.lane.b32.xlu0 %v284, 5
      %v355 = vpop.permute.xlu0 %354
      %356 = vrot.lane.b32.xlu0 %v285, 5
      %v357 = vpop.permute.xlu0 %356
      %358 = vrot.lane.b32.xlu0 %v286, 5
      %v359 = vpop.permute.xlu0 %358
      %360 = vrot.lane.b32.xlu0 %v287, 5
      %v361 = vpop.permute.xlu0 %360
      %362 = vrot.lane.b32.xlu0 %v288, 5
      %v363 = vpop.permute.xlu0 %362
      %364 = vrot.lane.b32.xlu0 %v289, 5
      %v365 = vpop.permute.xlu0 %364
      %366 = vrot.lane.b32.xlu0 %v290, 5
      %v367 = vpop.permute.xlu0 %366
      %368 = vrot.lane.b32.xlu0 %v291, 5
      %v369 = vpop.permute.xlu0 %368
      %370 = vrot.lane.b32.xlu0 %v292, 5
      %v371 = vpop.permute.xlu0 %370
      %372 = vrot.lane.b32.xlu0 %v293, 5
      %v373 = vpop.permute.xlu0 %372
      %374 = vrot.lane.b32.xlu0 %v294, 5
      %v375 = vpop.permute.xlu0 %374
      %376 = vrot.lane.b32.xlu0 %v295, 5
      %v377 = vpop.permute.xlu0 %376
      %378 = vrot.lane.b32.xlu0 %v296, 5
      %v379 = vpop.permute.xlu0 %378
      %380 = vrot.lane.b32.xlu0 %v297, 5
      %v381 = vpop.permute.xlu0 %380
      %vm410 = vcmask 80936
      %411 = vst.msk [vmem:[#allocation2] sm:$0xff] %vm410, %v327
      %vm412 = vcmask 78888
      %413 = vst.msk [vmem:[#allocation2 + $0x8] sm:$0x3f] %vm412, %v329
      %414 = vst.msk [vmem:[#allocation2 + $0x10] sm:$0xff] %vm410, %v331
      %415 = vst.msk [vmem:[#allocation2 + $0x18] sm:$0x3f] %vm412, %v333
      %416 = vst.msk [vmem:[#allocation2 + $0x20] sm:$0xff] %vm410, %v335
      %417 = vst.msk [vmem:[#allocation2 + $0x28] sm:$0x3f] %vm412, %v337
      %418 = vst.msk [vmem:[#allocation2 + $0x30] sm:$0xff] %vm410, %v339
      %419 = vst.msk [vmem:[#allocation2 + $0x38] sm:$0x3f] %vm412, %v341
      %420 = vst.msk [vmem:[#allocation2 + $0x40] sm:$0xff] %vm410, %v343
      %421 = vst.msk [vmem:[#allocation2 + $0x48] sm:$0x3f] %vm412, %v345
      %422 = vst.msk [vmem:[#allocation2 + $0x50] sm:$0xff] %vm410, %v347
      %423 = vst.msk [vmem:[#allocation2 + $0x58] sm:$0x3f] %vm412, %v349
      %424 = vst.msk [vmem:[#allocation2 + $0x60] sm:$0xff] %vm410, %v351
      %425 = vst.msk [vmem:[#allocation2 + $0x68] sm:$0x3f] %vm412, %v353
      %426 = vst.msk [vmem:[#allocation2 + $0x70] sm:$0xff] %vm410, %v355
      %427 = vst.msk [vmem:[#allocation2 + $0x78] sm:$0x3f] %vm412, %v357
      %428 = vst.msk [vmem:[#allocation2 + $0x80] sm:$0xff] %vm410, %v359
      %429 = vst.msk [vmem:[#allocation2 + $0x88] sm:$0x3f] %vm412, %v361
      %430 = vst.msk [vmem:[#allocation2 + $0x90] sm:$0xff] %vm410, %v363
      %431 = vst.msk [vmem:[#allocation2 + $0x98] sm:$0x3f] %vm412, %v365
      %432 = vst.msk [vmem:[#allocation2 + $0xa0] sm:$0xff] %vm410, %v367
      %433 = vst.msk [vmem:[#allocation2 + $0xa8] sm:$0x3f] %vm412, %v369
      %434 = vst.msk [vmem:[#allocation2 + $0xb0] sm:$0xff] %vm410, %v371
      %435 = vst.msk [vmem:[#allocation2 + $0xb8] sm:$0x3f] %vm412, %v373
      %436 = vst.msk [vmem:[#allocation2 + $0xc0] sm:$0xff] %vm410, %v375
      %437 = vst.msk [vmem:[#allocation2 + $0xc8] sm:$0x3f] %vm412, %v377
      %438 = vst.msk [vmem:[#allocation2 + $0xd0] sm:$0xff] %vm410, %v379
      %439 = vst.msk [vmem:[#allocation2 + $0xd8] sm:$0x3f] %vm412, %v381
      %v440 = vld [vmem:[%s200 + $0x2] sm:$0xff]
      %v441 = vld [vmem:[%s200 + $0xa] sm:$0x3f]
      %v442 = vld [vmem:[%s200 + $0x12] sm:$0xff]
      %v443 = vld [vmem:[%s200 + $0x1a] sm:$0x3f]
      %v444 = vld [vmem:[%s200 + $0x22] sm:$0xff]
      %v445 = vld [vmem:[%s200 + $0x2a] sm:$0x3f]
      %v446 = vld [vmem:[%s200 + $0x32] sm:$0xff]
      %v447 = vld [vmem:[%s200 + $0x3a] sm:$0x3f]
      %v448 = vld [vmem:[%s200 + $0x42] sm:$0xff]
      %v449 = vld [vmem:[%s200 + $0x4a] sm:$0x3f]
      %v450 = vld [vmem:[%s200 + $0x52] sm:$0xff]
      %v451 = vld [vmem:[%s200 + $0x5a] sm:$0x3f]
      %v452 = vld [vmem:[%s200 + $0x62] sm:$0xff]
      %v453 = vld [vmem:[%s200 + $0x6a] sm:$0x3f]
      %v454 = vld [vmem:[%s200 + $0x72] sm:$0xff]
      %v455 = vld [vmem:[%s200 + $0x7a] sm:$0x3f]
      %v456 = vld [vmem:[%s200 + $0x82] sm:$0xff]
      %v457 = vld [vmem:[%s200 + $0x8a] sm:$0x3f]
      %v458 = vld [vmem:[%s200 + $0x92] sm:$0xff]
      %v459 = vld [vmem:[%s200 + $0x9a] sm:$0x3f]
      %v460 = vld [vmem:[%s200 + $0xa2] sm:$0xff]
      %v461 = vld [vmem:[%s200 + $0xaa] sm:$0x3f]
      %v462 = vld [vmem:[%s200 + $0xb2] sm:$0xff]
      %v463 = vld [vmem:[%s200 + $0xba] sm:$0x3f]
      %v464 = vld [vmem:[%s200 + $0xc2] sm:$0xff]
      %v465 = vld [vmem:[%s200 + $0xca] sm:$0x3f]
      %v466 = vld [vmem:[%s200 + $0xd2] sm:$0xff]
      %v467 = vld [vmem:[%s200 + $0xda] sm:$0x3f]
      %496 = vrot.lane.b32.xlu0 %v440, 10
      %v497 = vpop.permute.xlu0 %496
      %498 = vrot.lane.b32.xlu0 %v441, 10
      %v499 = vpop.permute.xlu0 %498
      %500 = vrot.lane.b32.xlu0 %v442, 10
      %v501 = vpop.permute.xlu0 %500
      %502 = vrot.lane.b32.xlu0 %v443, 10
      %v503 = vpop.permute.xlu0 %502
      %504 = vrot.lane.b32.xlu0 %v444, 10
      %v505 = vpop.permute.xlu0 %504
      %506 = vrot.lane.b32.xlu0 %v445, 10
      %v507 = vpop.permute.xlu0 %506
      %508 = vrot.lane.b32.xlu0 %v446, 10
      %v509 = vpop.permute.xlu0 %508
      %510 = vrot.lane.b32.xlu0 %v447, 10
      %v511 = vpop.permute.xlu0 %510
      %512 = vrot.lane.b32.xlu0 %v448, 10
      %v513 = vpop.permute.xlu0 %512
      %514 = vrot.lane.b32.xlu0 %v449, 10
      %v515 = vpop.permute.xlu0 %514
      %516 = vrot.lane.b32.xlu0 %v450, 10
      %v517 = vpop.permute.xlu0 %516
      %518 = vrot.lane.b32.xlu0 %v451, 10
      %v519 = vpop.permute.xlu0 %518
      %520 = vrot.lane.b32.xlu0 %v452, 10
      %v521 = vpop.permute.xlu0 %520
      %522 = vrot.lane.b32.xlu0 %v453, 10
      %v523 = vpop.permute.xlu0 %522
      %524 = vrot.lane.b32.xlu0 %v454, 10
      %v525 = vpop.permute.xlu0 %524
      %526 = vrot.lane.b32.xlu0 %v455, 10
      %v527 = vpop.permute.xlu0 %526
      %528 = vrot.lane.b32.xlu0 %v456, 10
      %v529 = vpop.permute.xlu0 %528
      %530 = vrot.lane.b32.xlu0 %v457, 10
      %v531 = vpop.permute.xlu0 %530
      %532 = vrot.lane.b32.xlu0 %v458, 10
      %v533 = vpop.permute.xlu0 %532
      %534 = vrot.lane.b32.xlu0 %v459, 10
      %v535 = vpop.permute.xlu0 %534
      %536 = vrot.lane.b32.xlu0 %v460, 10
      %v537 = vpop.permute.xlu0 %536
      %538 = vrot.lane.b32.xlu0 %v461, 10
      %v539 = vpop.permute.xlu0 %538
      %540 = vrot.lane.b32.xlu0 %v462, 10
      %v541 = vpop.permute.xlu0 %540
      %542 = vrot.lane.b32.xlu0 %v463, 10
      %v543 = vpop.permute.xlu0 %542
      %544 = vrot.lane.b32.xlu0 %v464, 10
      %v545 = vpop.permute.xlu0 %544
      %546 = vrot.lane.b32.xlu0 %v465, 10
      %v547 = vpop.permute.xlu0 %546
      %548 = vrot.lane.b32.xlu0 %v466, 10
      %v549 = vpop.permute.xlu0 %548
      %550 = vrot.lane.b32.xlu0 %v467, 10
      %v551 = vpop.permute.xlu0 %550
      %vm580 = vcmask 121936
      %581 = vst.msk [vmem:[#allocation2] sm:$0xff] %vm580, %v497
      %vm582 = vcmask 119888
      %583 = vst.msk [vmem:[#allocation2 + $0x8] sm:$0x3f] %vm582, %v499
      %584 = vst.msk [vmem:[#allocation2 + $0x10] sm:$0xff] %vm580, %v501
      %585 = vst.msk [vmem:[#allocation2 + $0x18] sm:$0x3f] %vm582, %v503
      %586 = vst.msk [vmem:[#allocation2 + $0x20] sm:$0xff] %vm580, %v505
      %587 = vst.msk [vmem:[#allocation2 + $0x28] sm:$0x3f] %vm582, %v507
      %588 = vst.msk [vmem:[#allocation2 + $0x30] sm:$0xff] %vm580, %v509
      %589 = vst.msk [vmem:[#allocation2 + $0x38] sm:$0x3f] %vm582, %v511
      %590 = vst.msk [vmem:[#allocation2 + $0x40] sm:$0xff] %vm580, %v513
      %591 = vst.msk [vmem:[#allocation2 + $0x48] sm:$0x3f] %vm582, %v515
      %592 = vst.msk [vmem:[#allocation2 + $0x50] sm:$0xff] %vm580, %v517
      %593 = vst.msk [vmem:[#allocation2 + $0x58] sm:$0x3f] %vm582, %v519
      %594 = vst.msk [vmem:[#allocation2 + $0x60] sm:$0xff] %vm580, %v521
      %595 = vst.msk [vmem:[#allocation2 + $0x68] sm:$0x3f] %vm582, %v523
      %596 = vst.msk [vmem:[#allocation2 + $0x70] sm:$0xff] %vm580, %v525
      %597 = vst.msk [vmem:[#allocation2 + $0x78] sm:$0x3f] %vm582, %v527
      %598 = vst.msk [vmem:[#allocation2 + $0x80] sm:$0xff] %vm580, %v529
      %599 = vst.msk [vmem:[#allocation2 + $0x88] sm:$0x3f] %vm582, %v531
      %600 = vst.msk [vmem:[#allocation2 + $0x90] sm:$0xff] %vm580, %v533
      %601 = vst.msk [vmem:[#allocation2 + $0x98] sm:$0x3f] %vm582, %v535
      %602 = vst.msk [vmem:[#allocation2 + $0xa0] sm:$0xff] %vm580, %v537
      %603 = vst.msk [vmem:[#allocation2 + $0xa8] sm:$0x3f] %vm582, %v539
      %604 = vst.msk [vmem:[#allocation2 + $0xb0] sm:$0xff] %vm580, %v541
      %605 = vst.msk [vmem:[#allocation2 + $0xb8] sm:$0x3f] %vm582, %v543
      %606 = vst.msk [vmem:[#allocation2 + $0xc0] sm:$0xff] %vm580, %v545
      %607 = vst.msk [vmem:[#allocation2 + $0xc8] sm:$0x3f] %vm582, %v547
      %608 = vst.msk [vmem:[#allocation2 + $0xd0] sm:$0xff] %vm580, %v549
      %609 = vst.msk [vmem:[#allocation2 + $0xd8] sm:$0x3f] %vm582, %v551
      %s610 = scalar_lea.vmem %s200, 16
      %v611 = vld [vmem:[%s610] sm:$0xff]
      %v612 = vld [vmem:[%s610 + $0x8] sm:$0x3f]
      %v613 = vld [vmem:[%s610 + $0x10] sm:$0xff]
      %v614 = vld [vmem:[%s610 + $0x18] sm:$0x3f]
      %v615 = vld [vmem:[%s610 + $0x20] sm:$0xff]
      %v616 = vld [vmem:[%s610 + $0x28] sm:$0x3f]
      %v617 = vld [vmem:[%s610 + $0x30] sm:$0xff]
      %v618 = vld [vmem:[%s610 + $0x38] sm:$0x3f]
      %v619 = vld [vmem:[%s610 + $0x40] sm:$0xff]
      %v620 = vld [vmem:[%s610 + $0x48] sm:$0x3f]
      %v621 = vld [vmem:[%s610 + $0x50] sm:$0xff]
      %v622 = vld [vmem:[%s610 + $0x58] sm:$0x3f]
      %v623 = vld [vmem:[%s610 + $0x60] sm:$0xff]
      %v624 = vld [vmem:[%s610 + $0x68] sm:$0x3f]
      %v625 = vld [vmem:[%s610 + $0x70] sm:$0xff]
      %v626 = vld [vmem:[%s610 + $0x78] sm:$0x3f]
      %v627 = vld [vmem:[%s610 + $0x80] sm:$0xff]
      %v628 = vld [vmem:[%s610 + $0x88] sm:$0x3f]
      %v629 = vld [vmem:[%s610 + $0x90] sm:$0xff]
      %v630 = vld [vmem:[%s610 + $0x98] sm:$0x3f]
      %v631 = vld [vmem:[%s610 + $0xa0] sm:$0xff]
      %v632 = vld [vmem:[%s610 + $0xa8] sm:$0x3f]
      %v633 = vld [vmem:[%s610 + $0xb0] sm:$0xff]
      %v634 = vld [vmem:[%s610 + $0xb8] sm:$0x3f]
      %v635 = vld [vmem:[%s610 + $0xc0] sm:$0xff]
      %v636 = vld [vmem:[%s610 + $0xc8] sm:$0x3f]
      %v637 = vld [vmem:[%s610 + $0xd0] sm:$0xff]
      %v638 = vld [vmem:[%s610 + $0xd8] sm:$0x3f]
      %667 = vrot.lane.b32.xlu0 %v611, 15
      %v668 = vpop.permute.xlu0 %667
      %669 = vrot.lane.b32.xlu0 %v612, 15
      %v670 = vpop.permute.xlu0 %669
      %671 = vrot.lane.b32.xlu0 %v613, 15
      %v672 = vpop.permute.xlu0 %671
      %673 = vrot.lane.b32.xlu0 %v614, 15
      %v674 = vpop.permute.xlu0 %673
      %675 = vrot.lane.b32.xlu0 %v615, 15
      %v676 = vpop.permute.xlu0 %675
      %677 = vrot.lane.b32.xlu0 %v616, 15
      %v678 = vpop.permute.xlu0 %677
      %679 = vrot.lane.b32.xlu0 %v617, 15
      %v680 = vpop.permute.xlu0 %679
      %681 = vrot.lane.b32.xlu0 %v618, 15
      %v682 = vpop.permute.xlu0 %681
      %683 = vrot.lane.b32.xlu0 %v619, 15
      %v684 = vpop.permute.xlu0 %683
      %685 = vrot.lane.b32.xlu0 %v620, 15
      %v686 = vpop.permute.xlu0 %685
      %687 = vrot.lane.b32.xlu0 %v621, 15
      %v688 = vpop.permute.xlu0 %687
      %689 = vrot.lane.b32.xlu0 %v622, 15
      %v690 = vpop.permute.xlu0 %689
      %691 = vrot.lane.b32.xlu0 %v623, 15
      %v692 = vpop.permute.xlu0 %691
      %693 = vrot.lane.b32.xlu0 %v624, 15
      %v694 = vpop.permute.xlu0 %693
      %695 = vrot.lane.b32.xlu0 %v625, 15
      %v696 = vpop.permute.xlu0 %695
      %697 = vrot.lane.b32.xlu0 %v626, 15
      %v698 = vpop.permute.xlu0 %697
      %699 = vrot.lane.b32.xlu0 %v627, 15
      %v700 = vpop.permute.xlu0 %699
      %701 = vrot.lane.b32.xlu0 %v628, 15
      %v702 = vpop.permute.xlu0 %701
      %703 = vrot.lane.b32.xlu0 %v629, 15
      %v704 = vpop.permute.xlu0 %703
      %705 = vrot.lane.b32.xlu0 %v630, 15
      %v706 = vpop.permute.xlu0 %705
      %707 = vrot.lane.b32.xlu0 %v631, 15
      %v708 = vpop.permute.xlu0 %707
      %709 = vrot.lane.b32.xlu0 %v632, 15
      %v710 = vpop.permute.xlu0 %709
      %711 = vrot.lane.b32.xlu0 %v633, 15
      %v712 = vpop.permute.xlu0 %711
      %713 = vrot.lane.b32.xlu0 %v634, 15
      %v714 = vpop.permute.xlu0 %713
      %715 = vrot.lane.b32.xlu0 %v635, 15
      %v716 = vpop.permute.xlu0 %715
      %717 = vrot.lane.b32.xlu0 %v636, 15
      %v718 = vpop.permute.xlu0 %717
      %719 = vrot.lane.b32.xlu0 %v637, 15
      %v720 = vpop.permute.xlu0 %719
      %721 = vrot.lane.b32.xlu0 %v638, 15
      %v722 = vpop.permute.xlu0 %721
      %vm751 = vcmask 162936
      %752 = vst.msk [vmem:[#allocation2] sm:$0xff] %vm751, %v668
      %vm753 = vcmask 160888
      %754 = vst.msk [vmem:[#allocation2 + $0x8] sm:$0x3f] %vm753, %v670
      %755 = vst.msk [vmem:[#allocation2 + $0x10] sm:$0xff] %vm751, %v672
      %756 = vst.msk [vmem:[#allocation2 + $0x18] sm:$0x3f] %vm753, %v674
      %757 = vst.msk [vmem:[#allocation2 + $0x20] sm:$0xff] %vm751, %v676
      %758 = vst.msk [vmem:[#allocation2 + $0x28] sm:$0x3f] %vm753, %v678
      %759 = vst.msk [vmem:[#allocation2 + $0x30] sm:$0xff] %vm751, %v680
      %760 = vst.msk [vmem:[#allocation2 + $0x38] sm:$0x3f] %vm753, %v682
      %761 = vst.msk [vmem:[#allocation2 + $0x40] sm:$0xff] %vm751, %v684
      %762 = vst.msk [vmem:[#allocation2 + $0x48] sm:$0x3f] %vm753, %v686
      %763 = vst.msk [vmem:[#allocation2 + $0x50] sm:$0xff] %vm751, %v688
      %764 = vst.msk [vmem:[#allocation2 + $0x58] sm:$0x3f] %vm753, %v690
      %765 = vst.msk [vmem:[#allocation2 + $0x60] sm:$0xff] %vm751, %v692
      %766 = vst.msk [vmem:[#allocation2 + $0x68] sm:$0x3f] %vm753, %v694
      %767 = vst.msk [vmem:[#allocation2 + $0x70] sm:$0xff] %vm751, %v696
      %768 = vst.msk [vmem:[#allocation2 + $0x78] sm:$0x3f] %vm753, %v698
      %769 = vst.msk [vmem:[#allocation2 + $0x80] sm:$0xff] %vm751, %v700
      %770 = vst.msk [vmem:[#allocation2 + $0x88] sm:$0x3f] %vm753, %v702
      %771 = vst.msk [vmem:[#allocation2 + $0x90] sm:$0xff] %vm751, %v704
      %772 = vst.msk [vmem:[#allocation2 + $0x98] sm:$0x3f] %vm753, %v706
      %773 = vst.msk [vmem:[#allocation2 + $0xa0] sm:$0xff] %vm751, %v708
      %774 = vst.msk [vmem:[#allocation2 + $0xa8] sm:$0x3f] %vm753, %v710
      %775 = vst.msk [vmem:[#allocation2 + $0xb0] sm:$0xff] %vm751, %v712
      %776 = vst.msk [vmem:[#allocation2 + $0xb8] sm:$0x3f] %vm753, %v714
      %777 = vst.msk [vmem:[#allocation2 + $0xc0] sm:$0xff] %vm751, %v716
      %778 = vst.msk [vmem:[#allocation2 + $0xc8] sm:$0x3f] %vm753, %v718
      %779 = vst.msk [vmem:[#allocation2 + $0xd0] sm:$0xff] %vm751, %v720
      %780 = vst.msk [vmem:[#allocation2 + $0xd8] sm:$0x3f] %vm753, %v722
      %v781 = vld [vmem:[%s610 + $0x1] sm:$0xff]
      %v782 = vld [vmem:[%s610 + $0x9] sm:$0x3f]
      %v783 = vld [vmem:[%s610 + $0x11] sm:$0xff]
      %v784 = vld [vmem:[%s610 + $0x19] sm:$0x3f]
      %v785 = vld [vmem:[%s610 + $0x21] sm:$0xff]
      %v786 = vld [vmem:[%s610 + $0x29] sm:$0x3f]
      %v787 = vld [vmem:[%s610 + $0x31] sm:$0xff]
      %v788 = vld [vmem:[%s610 + $0x39] sm:$0x3f]
      %v789 = vld [vmem:[%s610 + $0x41] sm:$0xff]
      %v790 = vld [vmem:[%s610 + $0x49] sm:$0x3f]
      %v791 = vld [vmem:[%s610 + $0x51] sm:$0xff]
      %v792 = vld [vmem:[%s610 + $0x59] sm:$0x3f]
      %v793 = vld [vmem:[%s610 + $0x61] sm:$0xff]
      %v794 = vld [vmem:[%s610 + $0x69] sm:$0x3f]
      %v795 = vld [vmem:[%s610 + $0x71] sm:$0xff]
      %v796 = vld [vmem:[%s610 + $0x79] sm:$0x3f]
      %v797 = vld [vmem:[%s610 + $0x81] sm:$0xff]
      %v798 = vld [vmem:[%s610 + $0x89] sm:$0x3f]
      %v799 = vld [vmem:[%s610 + $0x91] sm:$0xff]
      %v800 = vld [vmem:[%s610 + $0x99] sm:$0x3f]
      %v801 = vld [vmem:[%s610 + $0xa1] sm:$0xff]
      %v802 = vld [vmem:[%s610 + $0xa9] sm:$0x3f]
      %v803 = vld [vmem:[%s610 + $0xb1] sm:$0xff]
      %v804 = vld [vmem:[%s610 + $0xb9] sm:$0x3f]
      %v805 = vld [vmem:[%s610 + $0xc1] sm:$0xff]
      %v806 = vld [vmem:[%s610 + $0xc9] sm:$0x3f]
      %v807 = vld [vmem:[%s610 + $0xd1] sm:$0xff]
      %v808 = vld [vmem:[%s610 + $0xd9] sm:$0x3f]
      %837 = vrot.lane.b32.xlu0 %v781, 20
      %v838 = vpop.permute.xlu0 %837
      %839 = vrot.lane.b32.xlu0 %v782, 20
      %v840 = vpop.permute.xlu0 %839
      %841 = vrot.lane.b32.xlu0 %v783, 20
      %v842 = vpop.permute.xlu0 %841
      %843 = vrot.lane.b32.xlu0 %v784, 20
      %v844 = vpop.permute.xlu0 %843
      %845 = vrot.lane.b32.xlu0 %v785, 20
      %v846 = vpop.permute.xlu0 %845
      %847 = vrot.lane.b32.xlu0 %v786, 20
      %v848 = vpop.permute.xlu0 %847
      %849 = vrot.lane.b32.xlu0 %v787, 20
      %v850 = vpop.permute.xlu0 %849
      %851 = vrot.lane.b32.xlu0 %v788, 20
      %v852 = vpop.permute.xlu0 %851
      %853 = vrot.lane.b32.xlu0 %v789, 20
      %v854 = vpop.permute.xlu0 %853
      %855 = vrot.lane.b32.xlu0 %v790, 20
      %v856 = vpop.permute.xlu0 %855
      %857 = vrot.lane.b32.xlu0 %v791, 20
      %v858 = vpop.permute.xlu0 %857
      %859 = vrot.lane.b32.xlu0 %v792, 20
      %v860 = vpop.permute.xlu0 %859
      %861 = vrot.lane.b32.xlu0 %v793, 20
      %v862 = vpop.permute.xlu0 %861
      %863 = vrot.lane.b32.xlu0 %v794, 20
      %v864 = vpop.permute.xlu0 %863
      %865 = vrot.lane.b32.xlu0 %v795, 20
      %v866 = vpop.permute.xlu0 %865
      %867 = vrot.lane.b32.xlu0 %v796, 20
      %v868 = vpop.permute.xlu0 %867
      %869 = vrot.lane.b32.xlu0 %v797, 20
      %v870 = vpop.permute.xlu0 %869
      %871 = vrot.lane.b32.xlu0 %v798, 20
      %v872 = vpop.permute.xlu0 %871
      %873 = vrot.lane.b32.xlu0 %v799, 20
      %v874 = vpop.permute.xlu0 %873
      %875 = vrot.lane.b32.xlu0 %v800, 20
      %v876 = vpop.permute.xlu0 %875
      %877 = vrot.lane.b32.xlu0 %v801, 20
      %v878 = vpop.permute.xlu0 %877
      %879 = vrot.lane.b32.xlu0 %v802, 20
      %v880 = vpop.permute.xlu0 %879
      %881 = vrot.lane.b32.xlu0 %v803, 20
      %v882 = vpop.permute.xlu0 %881
      %883 = vrot.lane.b32.xlu0 %v804, 20
      %v884 = vpop.permute.xlu0 %883
      %885 = vrot.lane.b32.xlu0 %v805, 20
      %v886 = vpop.permute.xlu0 %885
      %887 = vrot.lane.b32.xlu0 %v806, 20
      %v888 = vpop.permute.xlu0 %887
      %889 = vrot.lane.b32.xlu0 %v807, 20
      %v890 = vpop.permute.xlu0 %889
      %891 = vrot.lane.b32.xlu0 %v808, 20
      %v892 = vpop.permute.xlu0 %891
      %vm921 = vcmask 203936
      %922 = vst.msk [vmem:[#allocation2] sm:$0xff] %vm921, %v838
      %vm923 = vcmask 201888
      %924 = vst.msk [vmem:[#allocation2 + $0x8] sm:$0x3f] %vm923, %v840
      %925 = vst.msk [vmem:[#allocation2 + $0x10] sm:$0xff] %vm921, %v842
      %926 = vst.msk [vmem:[#allocation2 + $0x18] sm:$0x3f] %vm923, %v844
      %927 = vst.msk [vmem:[#allocation2 + $0x20] sm:$0xff] %vm921, %v846
      %928 = vst.msk [vmem:[#allocation2 + $0x28] sm:$0x3f] %vm923, %v848
      %929 = vst.msk [vmem:[#allocation2 + $0x30] sm:$0xff] %vm921, %v850
      %930 = vst.msk [vmem:[#allocation2 + $0x38] sm:$0x3f] %vm923, %v852
      %931 = vst.msk [vmem:[#allocation2 + $0x40] sm:$0xff] %vm921, %v854
      %932 = vst.msk [vmem:[#allocation2 + $0x48] sm:$0x3f] %vm923, %v856
      %933 = vst.msk [vmem:[#allocation2 + $0x50] sm:$0xff] %vm921, %v858
      %934 = vst.msk [vmem:[#allocation2 + $0x58] sm:$0x3f] %vm923, %v860
      %935 = vst.msk [vmem:[#allocation2 + $0x60] sm:$0xff] %vm921, %v862
      %936 = vst.msk [vmem:[#allocation2 + $0x68] sm:$0x3f] %vm923, %v864
      %937 = vst.msk [vmem:[#allocation2 + $0x70] sm:$0xff] %vm921, %v866
      %938 = vst.msk [vmem:[#allocation2 + $0x78] sm:$0x3f] %vm923, %v868
      %939 = vst.msk [vmem:[#allocation2 + $0x80] sm:$0xff] %vm921, %v870
      %940 = vst.msk [vmem:[#allocation2 + $0x88] sm:$0x3f] %vm923, %v872
      %941 = vst.msk [vmem:[#allocation2 + $0x90] sm:$0xff] %vm921, %v874
      %942 = vst.msk [vmem:[#allocation2 + $0x98] sm:$0x3f] %vm923, %v876
      %943 = vst.msk [vmem:[#allocation2 + $0xa0] sm:$0xff] %vm921, %v878
      %944 = vst.msk [vmem:[#allocation2 + $0xa8] sm:$0x3f] %vm923, %v880
      %945 = vst.msk [vmem:[#allocation2 + $0xb0] sm:$0xff] %vm921, %v882
      %946 = vst.msk [vmem:[#allocation2 + $0xb8] sm:$0x3f] %vm923, %v884
      %947 = vst.msk [vmem:[#allocation2 + $0xc0] sm:$0xff] %vm921, %v886
      %948 = vst.msk [vmem:[#allocation2 + $0xc8] sm:$0x3f] %vm923, %v888
      %949 = vst.msk [vmem:[#allocation2 + $0xd0] sm:$0xff] %vm921, %v890
      %950 = vst.msk [vmem:[#allocation2 + $0xd8] sm:$0x3f] %vm923, %v892
      %v951 = vld [vmem:[%s610 + $0x2] sm:$0xff]
      %v952 = vld [vmem:[%s610 + $0xa] sm:$0x3f]
      %v953 = vld [vmem:[%s610 + $0x12] sm:$0xff]
      %v954 = vld [vmem:[%s610 + $0x1a] sm:$0x3f]
      %v955 = vld [vmem:[%s610 + $0x22] sm:$0xff]
      %v956 = vld [vmem:[%s610 + $0x2a] sm:$0x3f]
      %v957 = vld [vmem:[%s610 + $0x32] sm:$0xff]
      %v958 = vld [vmem:[%s610 + $0x3a] sm:$0x3f]
      %v959 = vld [vmem:[%s610 + $0x42] sm:$0xff]
      %v960 = vld [vmem:[%s610 + $0x4a] sm:$0x3f]
      %v961 = vld [vmem:[%s610 + $0x52] sm:$0xff]
      %v962 = vld [vmem:[%s610 + $0x5a] sm:$0x3f]
      %v963 = vld [vmem:[%s610 + $0x62] sm:$0xff]
      %v964 = vld [vmem:[%s610 + $0x6a] sm:$0x3f]
      %v965 = vld [vmem:[%s610 + $0x72] sm:$0xff]
      %v966 = vld [vmem:[%s610 + $0x7a] sm:$0x3f]
      %v967 = vld [vmem:[%s610 + $0x82] sm:$0xff]
      %v968 = vld [vmem:[%s610 + $0x8a] sm:$0x3f]
      %v969 = vld [vmem:[%s610 + $0x92] sm:$0xff]
      %v970 = vld [vmem:[%s610 + $0x9a] sm:$0x3f]
      %v971 = vld [vmem:[%s610 + $0xa2] sm:$0xff]
      %v972 = vld [vmem:[%s610 + $0xaa] sm:$0x3f]
      %v973 = vld [vmem:[%s610 + $0xb2] sm:$0xff]
      %v974 = vld [vmem:[%s610 + $0xba] sm:$0x3f]
      %v975 = vld [vmem:[%s610 + $0xc2] sm:$0xff]
      %v976 = vld [vmem:[%s610 + $0xca] sm:$0x3f]
      %v977 = vld [vmem:[%s610 + $0xd2] sm:$0xff]
      %v978 = vld [vmem:[%s610 + $0xda] sm:$0x3f]
      %1007 = vrot.lane.b32.xlu0 %v951, 25
      %v1008 = vpop.permute.xlu0 %1007
      %1009 = vrot.lane.b32.xlu0 %v952, 25
      %v1010 = vpop.permute.xlu0 %1009
      %1011 = vrot.lane.b32.xlu0 %v953, 25
      %v1012 = vpop.permute.xlu0 %1011
      %1013 = vrot.lane.b32.xlu0 %v954, 25
      %v1014 = vpop.permute.xlu0 %1013
      %1015 = vrot.lane.b32.xlu0 %v955, 25
      %v1016 = vpop.permute.xlu0 %1015
      %1017 = vrot.lane.b32.xlu0 %v956, 25
      %v1018 = vpop.permute.xlu0 %1017
      %1019 = vrot.lane.b32.xlu0 %v957, 25
      %v1020 = vpop.permute.xlu0 %1019
      %1021 = vrot.lane.b32.xlu0 %v958, 25
      %v1022 = vpop.permute.xlu0 %1021
      %1023 = vrot.lane.b32.xlu0 %v959, 25
      %v1024 = vpop.permute.xlu0 %1023
      %1025 = vrot.lane.b32.xlu0 %v960, 25
      %v1026 = vpop.permute.xlu0 %1025
      %1027 = vrot.lane.b32.xlu0 %v961, 25
      %v1028 = vpop.permute.xlu0 %1027
      %1029 = vrot.lane.b32.xlu0 %v962, 25
      %v1030 = vpop.permute.xlu0 %1029
      %1031 = vrot.lane.b32.xlu0 %v963, 25
      %v1032 = vpop.permute.xlu0 %1031
      %1033 = vrot.lane.b32.xlu0 %v964, 25
      %v1034 = vpop.permute.xlu0 %1033
      %1035 = vrot.lane.b32.xlu0 %v965, 25
      %v1036 = vpop.permute.xlu0 %1035
      %1037 = vrot.lane.b32.xlu0 %v966, 25
      %v1038 = vpop.permute.xlu0 %1037
      %1039 = vrot.lane.b32.xlu0 %v967, 25
      %v1040 = vpop.permute.xlu0 %1039
      %1041 = vrot.lane.b32.xlu0 %v968, 25
      %v1042 = vpop.permute.xlu0 %1041
      %1043 = vrot.lane.b32.xlu0 %v969, 25
      %v1044 = vpop.permute.xlu0 %1043
      %1045 = vrot.lane.b32.xlu0 %v970, 25
      %v1046 = vpop.permute.xlu0 %1045
      %1047 = vrot.lane.b32.xlu0 %v971, 25
      %v1048 = vpop.permute.xlu0 %1047
      %1049 = vrot.lane.b32.xlu0 %v972, 25
      %v1050 = vpop.permute.xlu0 %1049
      %1051 = vrot.lane.b32.xlu0 %v973, 25
      %v1052 = vpop.permute.xlu0 %1051
      %1053 = vrot.lane.b32.xlu0 %v974, 25
      %v1054 = vpop.permute.xlu0 %1053
      %1055 = vrot.lane.b32.xlu0 %v975, 25
      %v1056 = vpop.permute.xlu0 %1055
      %1057 = vrot.lane.b32.xlu0 %v976, 25
      %v1058 = vpop.permute.xlu0 %1057
      %1059 = vrot.lane.b32.xlu0 %v977, 25
      %v1060 = vpop.permute.xlu0 %1059
      %1061 = vrot.lane.b32.xlu0 %v978, 25
      %v1062 = vpop.permute.xlu0 %1061
      %vm1091 = vcmask 244936
      %1092 = vst.msk [vmem:[#allocation2] sm:$0xff] %vm1091, %v1008
      %vm1093 = vcmask 242888
      %1094 = vst.msk [vmem:[#allocation2 + $0x8] sm:$0x3f] %vm1093, %v1010
      %1095 = vst.msk [vmem:[#allocation2 + $0x10] sm:$0xff] %vm1091, %v1012
      %1096 = vst.msk [vmem:[#allocation2 + $0x18] sm:$0x3f] %vm1093, %v1014
      %1097 = vst.msk [vmem:[#allocation2 + $0x20] sm:$0xff] %vm1091, %v1016
      %1098 = vst.msk [vmem:[#allocation2 + $0x28] sm:$0x3f] %vm1093, %v1018
      %1099 = vst.msk [vmem:[#allocation2 + $0x30] sm:$0xff] %vm1091, %v1020
      %1100 = vst.msk [vmem:[#allocation2 + $0x38] sm:$0x3f] %vm1093, %v1022
      %1101 = vst.msk [vmem:[#allocation2 + $0x40] sm:$0xff] %vm1091, %v1024
      %1102 = vst.msk [vmem:[#allocation2 + $0x48] sm:$0x3f] %vm1093, %v1026
      %1103 = vst.msk [vmem:[#allocation2 + $0x50] sm:$0xff] %vm1091, %v1028
      %1104 = vst.msk [vmem:[#allocation2 + $0x58] sm:$0x3f] %vm1093, %v1030
      %1105 = vst.msk [vmem:[#allocation2 + $0x60] sm:$0xff] %vm1091, %v1032
      %1106 = vst.msk [vmem:[#allocation2 + $0x68] sm:$0x3f] %vm1093, %v1034
      %1107 = vst.msk [vmem:[#allocation2 + $0x70] sm:$0xff] %vm1091, %v1036
      %1108 = vst.msk [vmem:[#allocation2 + $0x78] sm:$0x3f] %vm1093, %v1038
      %1109 = vst.msk [vmem:[#allocation2 + $0x80] sm:$0xff] %vm1091, %v1040
      %1110 = vst.msk [vmem:[#allocation2 + $0x88] sm:$0x3f] %vm1093, %v1042
      %1111 = vst.msk [vmem:[#allocation2 + $0x90] sm:$0xff] %vm1091, %v1044
      %1112 = vst.msk [vmem:[#allocation2 + $0x98] sm:$0x3f] %vm1093, %v1046
      %1113 = vst.msk [vmem:[#allocation2 + $0xa0] sm:$0xff] %vm1091, %v1048
      %1114 = vst.msk [vmem:[#allocation2 + $0xa8] sm:$0x3f] %vm1093, %v1050
      %1115 = vst.msk [vmem:[#allocation2 + $0xb0] sm:$0xff] %vm1091, %v1052
      %1116 = vst.msk [vmem:[#allocation2 + $0xb8] sm:$0x3f] %vm1093, %v1054
      %1117 = vst.msk [vmem:[#allocation2 + $0xc0] sm:$0xff] %vm1091, %v1056
      %1118 = vst.msk [vmem:[#allocation2 + $0xc8] sm:$0x3f] %vm1093, %v1058
      %1119 = vst.msk [vmem:[#allocation2 + $0xd0] sm:$0xff] %vm1091, %v1060
      %1120 = vst.msk [vmem:[#allocation2 + $0xd8] sm:$0x3f] %vm1093, %v1062
      %s1121 = scalar_lea.vmem %s200, 32
      %v1122 = vld [vmem:[%s1121] sm:$0xff]
      %v1123 = vld [vmem:[%s1121 + $0x8] sm:$0x3f]
      %v1124 = vld [vmem:[%s1121 + $0x10] sm:$0xff]
      %v1125 = vld [vmem:[%s1121 + $0x18] sm:$0x3f]
      %v1126 = vld [vmem:[%s1121 + $0x20] sm:$0xff]
      %v1127 = vld [vmem:[%s1121 + $0x28] sm:$0x3f]
      %v1128 = vld [vmem:[%s1121 + $0x30] sm:$0xff]
      %v1129 = vld [vmem:[%s1121 + $0x38] sm:$0x3f]
      %v1130 = vld [vmem:[%s1121 + $0x40] sm:$0xff]
      %v1131 = vld [vmem:[%s1121 + $0x48] sm:$0x3f]
      %v1132 = vld [vmem:[%s1121 + $0x50] sm:$0xff]
      %v1133 = vld [vmem:[%s1121 + $0x58] sm:$0x3f]
      %v1134 = vld [vmem:[%s1121 + $0x60] sm:$0xff]
      %v1135 = vld [vmem:[%s1121 + $0x68] sm:$0x3f]
      %v1136 = vld [vmem:[%s1121 + $0x70] sm:$0xff]
      %v1137 = vld [vmem:[%s1121 + $0x78] sm:$0x3f]
      %v1138 = vld [vmem:[%s1121 + $0x80] sm:$0xff]
      %v1139 = vld [vmem:[%s1121 + $0x88] sm:$0x3f]
      %v1140 = vld [vmem:[%s1121 + $0x90] sm:$0xff]
      %v1141 = vld [vmem:[%s1121 + $0x98] sm:$0x3f]
      %v1142 = vld [vmem:[%s1121 + $0xa0] sm:$0xff]
      %v1143 = vld [vmem:[%s1121 + $0xa8] sm:$0x3f]
      %v1144 = vld [vmem:[%s1121 + $0xb0] sm:$0xff]
      %v1145 = vld [vmem:[%s1121 + $0xb8] sm:$0x3f]
      %v1146 = vld [vmem:[%s1121 + $0xc0] sm:$0xff]
      %v1147 = vld [vmem:[%s1121 + $0xc8] sm:$0x3f]
      %v1148 = vld [vmem:[%s1121 + $0xd0] sm:$0xff]
      %v1149 = vld [vmem:[%s1121 + $0xd8] sm:$0x3f]
      %1178 = vrot.lane.b32.xlu0 %v1122, 30
      %v1179 = vpop.permute.xlu0 %1178
      %1180 = vrot.lane.b32.xlu0 %v1123, 30
      %v1181 = vpop.permute.xlu0 %1180
      %1182 = vrot.lane.b32.xlu0 %v1124, 30
      %v1183 = vpop.permute.xlu0 %1182
      %1184 = vrot.lane.b32.xlu0 %v1125, 30
      %v1185 = vpop.permute.xlu0 %1184
      %1186 = vrot.lane.b32.xlu0 %v1126, 30
      %v1187 = vpop.permute.xlu0 %1186
      %1188 = vrot.lane.b32.xlu0 %v1127, 30
      %v1189 = vpop.permute.xlu0 %1188
      %1190 = vrot.lane.b32.xlu0 %v1128, 30
      %v1191 = vpop.permute.xlu0 %1190
      %1192 = vrot.lane.b32.xlu0 %v1129, 30
      %v1193 = vpop.permute.xlu0 %1192
      %1194 = vrot.lane.b32.xlu0 %v1130, 30
      %v1195 = vpop.permute.xlu0 %1194
      %1196 = vrot.lane.b32.xlu0 %v1131, 30
      %v1197 = vpop.permute.xlu0 %1196
      %1198 = vrot.lane.b32.xlu0 %v1132, 30
      %v1199 = vpop.permute.xlu0 %1198
      %1200 = vrot.lane.b32.xlu0 %v1133, 30
      %v1201 = vpop.permute.xlu0 %1200
      %1202 = vrot.lane.b32.xlu0 %v1134, 30
      %v1203 = vpop.permute.xlu0 %1202
      %1204 = vrot.lane.b32.xlu0 %v1135, 30
      %v1205 = vpop.permute.xlu0 %1204
      %1206 = vrot.lane.b32.xlu0 %v1136, 30
      %v1207 = vpop.permute.xlu0 %1206
      %1208 = vrot.lane.b32.xlu0 %v1137, 30
      %v1209 = vpop.permute.xlu0 %1208
      %1210 = vrot.lane.b32.xlu0 %v1138, 30
      %v1211 = vpop.permute.xlu0 %1210
      %1212 = vrot.lane.b32.xlu0 %v1139, 30
      %v1213 = vpop.permute.xlu0 %1212
      %1214 = vrot.lane.b32.xlu0 %v1140, 30
      %v1215 = vpop.permute.xlu0 %1214
      %1216 = vrot.lane.b32.xlu0 %v1141, 30
      %v1217 = vpop.permute.xlu0 %1216
      %1218 = vrot.lane.b32.xlu0 %v1142, 30
      %v1219 = vpop.permute.xlu0 %1218
      %1220 = vrot.lane.b32.xlu0 %v1143, 30
      %v1221 = vpop.permute.xlu0 %1220
      %1222 = vrot.lane.b32.xlu0 %v1144, 30
      %v1223 = vpop.permute.xlu0 %1222
      %1224 = vrot.lane.b32.xlu0 %v1145, 30
      %v1225 = vpop.permute.xlu0 %1224
      %1226 = vrot.lane.b32.xlu0 %v1146, 30
      %v1227 = vpop.permute.xlu0 %1226
      %1228 = vrot.lane.b32.xlu0 %v1147, 30
      %v1229 = vpop.permute.xlu0 %1228
      %1230 = vrot.lane.b32.xlu0 %v1148, 30
      %v1231 = vpop.permute.xlu0 %1230
      %1232 = vrot.lane.b32.xlu0 %v1149, 30
      %v1233 = vpop.permute.xlu0 %1232
      %vm1262 = vcmask 285936
      %1263 = vst.msk [vmem:[#allocation2] sm:$0xff] %vm1262, %v1179
      %vm1264 = vcmask 283888
      %1265 = vst.msk [vmem:[#allocation2 + $0x8] sm:$0x3f] %vm1264, %v1181
      %1266 = vst.msk [vmem:[#allocation2 + $0x10] sm:$0xff] %vm1262, %v1183
      %1267 = vst.msk [vmem:[#allocation2 + $0x18] sm:$0x3f] %vm1264, %v1185
      %1268 = vst.msk [vmem:[#allocation2 + $0x20] sm:$0xff] %vm1262, %v1187
      %1269 = vst.msk [vmem:[#allocation2 + $0x28] sm:$0x3f] %vm1264, %v1189
      %1270 = vst.msk [vmem:[#allocation2 + $0x30] sm:$0xff] %vm1262, %v1191
      %1271 = vst.msk [vmem:[#allocation2 + $0x38] sm:$0x3f] %vm1264, %v1193
      %1272 = vst.msk [vmem:[#allocation2 + $0x40] sm:$0xff] %vm1262, %v1195
      %1273 = vst.msk [vmem:[#allocation2 + $0x48] sm:$0x3f] %vm1264, %v1197
      %1274 = vst.msk [vmem:[#allocation2 + $0x50] sm:$0xff] %vm1262, %v1199
      %1275 = vst.msk [vmem:[#allocation2 + $0x58] sm:$0x3f] %vm1264, %v1201
      %1276 = vst.msk [vmem:[#allocation2 + $0x60] sm:$0xff] %vm1262, %v1203
      %1277 = vst.msk [vmem:[#allocation2 + $0x68] sm:$0x3f] %vm1264, %v1205
      %1278 = vst.msk [vmem:[#allocation2 + $0x70] sm:$0xff] %vm1262, %v1207
      %1279 = vst.msk [vmem:[#allocation2 + $0x78] sm:$0x3f] %vm1264, %v1209
      %1280 = vst.msk [vmem:[#allocation2 + $0x80] sm:$0xff] %vm1262, %v1211
      %1281 = vst.msk [vmem:[#allocation2 + $0x88] sm:$0x3f] %vm1264, %v1213
      %1282 = vst.msk [vmem:[#allocation2 + $0x90] sm:$0xff] %vm1262, %v1215
      %1283 = vst.msk [vmem:[#allocation2 + $0x98] sm:$0x3f] %vm1264, %v1217
      %1284 = vst.msk [vmem:[#allocation2 + $0xa0] sm:$0xff] %vm1262, %v1219
      %1285 = vst.msk [vmem:[#allocation2 + $0xa8] sm:$0x3f] %vm1264, %v1221
      %1286 = vst.msk [vmem:[#allocation2 + $0xb0] sm:$0xff] %vm1262, %v1223
      %1287 = vst.msk [vmem:[#allocation2 + $0xb8] sm:$0x3f] %vm1264, %v1225
      %1288 = vst.msk [vmem:[#allocation2 + $0xc0] sm:$0xff] %vm1262, %v1227
      %1289 = vst.msk [vmem:[#allocation2 + $0xc8] sm:$0x3f] %vm1264, %v1229
      %1290 = vst.msk [vmem:[#allocation2 + $0xd0] sm:$0xff] %vm1262, %v1231
      %1291 = vst.msk [vmem:[#allocation2 + $0xd8] sm:$0x3f] %vm1264, %v1233
      %v1292 = vld [vmem:[%s1121 + $0x1] sm:$0xff]
      %v1293 = vld [vmem:[%s1121 + $0x9] sm:$0x3f]
      %v1294 = vld [vmem:[%s1121 + $0x11] sm:$0xff]
      %v1295 = vld [vmem:[%s1121 + $0x19] sm:$0x3f]
      %v1296 = vld [vmem:[%s1121 + $0x21] sm:$0xff]
      %v1297 = vld [vmem:[%s1121 + $0x29] sm:$0x3f]
      %v1298 = vld [vmem:[%s1121 + $0x31] sm:$0xff]
      %v1299 = vld [vmem:[%s1121 + $0x39] sm:$0x3f]
      %v1300 = vld [vmem:[%s1121 + $0x41] sm:$0xff]
      %v1301 = vld [vmem:[%s1121 + $0x49] sm:$0x3f]
      %v1302 = vld [vmem:[%s1121 + $0x51] sm:$0xff]
      %v1303 = vld [vmem:[%s1121 + $0x59] sm:$0x3f]
      %v1304 = vld [vmem:[%s1121 + $0x61] sm:$0xff]
      %v1305 = vld [vmem:[%s1121 + $0x69] sm:$0x3f]
      %v1306 = vld [vmem:[%s1121 + $0x71] sm:$0xff]
      %v1307 = vld [vmem:[%s1121 + $0x79] sm:$0x3f]
      %v1308 = vld [vmem:[%s1121 + $0x81] sm:$0xff]
      %v1309 = vld [vmem:[%s1121 + $0x89] sm:$0x3f]
      %v1310 = vld [vmem:[%s1121 + $0x91] sm:$0xff]
      %v1311 = vld [vmem:[%s1121 + $0x99] sm:$0x3f]
      %v1312 = vld [vmem:[%s1121 + $0xa1] sm:$0xff]
      %v1313 = vld [vmem:[%s1121 + $0xa9] sm:$0x3f]
      %v1314 = vld [vmem:[%s1121 + $0xb1] sm:$0xff]
      %v1315 = vld [vmem:[%s1121 + $0xb9] sm:$0x3f]
      %v1316 = vld [vmem:[%s1121 + $0xc1] sm:$0xff]
      %v1317 = vld [vmem:[%s1121 + $0xc9] sm:$0x3f]
      %v1318 = vld [vmem:[%s1121 + $0xd1] sm:$0xff]
      %v1319 = vld [vmem:[%s1121 + $0xd9] sm:$0x3f]
      %1348 = vrot.lane.b32.xlu0 %v1292, 35
      %v1349 = vpop.permute.xlu0 %1348
      %1350 = vrot.lane.b32.xlu0 %v1293, 35
      %v1351 = vpop.permute.xlu0 %1350
      %1352 = vrot.lane.b32.xlu0 %v1294, 35
      %v1353 = vpop.permute.xlu0 %1352
      %1354 = vrot.lane.b32.xlu0 %v1295, 35
      %v1355 = vpop.permute.xlu0 %1354
      %1356 = vrot.lane.b32.xlu0 %v1296, 35
      %v1357 = vpop.permute.xlu0 %1356
      %1358 = vrot.lane.b32.xlu0 %v1297, 35
      %v1359 = vpop.permute.xlu0 %1358
      %1360 = vrot.lane.b32.xlu0 %v1298, 35
      %v1361 = vpop.permute.xlu0 %1360
      %1362 = vrot.lane.b32.xlu0 %v1299, 35
      %v1363 = vpop.permute.xlu0 %1362
      %1364 = vrot.lane.b32.xlu0 %v1300, 35
      %v1365 = vpop.permute.xlu0 %1364
      %1366 = vrot.lane.b32.xlu0 %v1301, 35
      %v1367 = vpop.permute.xlu0 %1366
      %1368 = vrot.lane.b32.xlu0 %v1302, 35
      %v1369 = vpop.permute.xlu0 %1368
      %1370 = vrot.lane.b32.xlu0 %v1303, 35
      %v1371 = vpop.permute.xlu0 %1370
      %1372 = vrot.lane.b32.xlu0 %v1304, 35
      %v1373 = vpop.permute.xlu0 %1372
      %1374 = vrot.lane.b32.xlu0 %v1305, 35
      %v1375 = vpop.permute.xlu0 %1374
      %1376 = vrot.lane.b32.xlu0 %v1306, 35
      %v1377 = vpop.permute.xlu0 %1376
      %1378 = vrot.lane.b32.xlu0 %v1307, 35
      %v1379 = vpop.permute.xlu0 %1378
      %1380 = vrot.lane.b32.xlu0 %v1308, 35
      %v1381 = vpop.permute.xlu0 %1380
      %1382 = vrot.lane.b32.xlu0 %v1309, 35
      %v1383 = vpop.permute.xlu0 %1382
      %1384 = vrot.lane.b32.xlu0 %v1310, 35
      %v1385 = vpop.permute.xlu0 %1384
      %1386 = vrot.lane.b32.xlu0 %v1311, 35
      %v1387 = vpop.permute.xlu0 %1386
      %1388 = vrot.lane.b32.xlu0 %v1312, 35
      %v1389 = vpop.permute.xlu0 %1388
      %1390 = vrot.lane.b32.xlu0 %v1313, 35
      %v1391 = vpop.permute.xlu0 %1390
      %1392 = vrot.lane.b32.xlu0 %v1314, 35
      %v1393 = vpop.permute.xlu0 %1392
      %1394 = vrot.lane.b32.xlu0 %v1315, 35
      %v1395 = vpop.permute.xlu0 %1394
      %1396 = vrot.lane.b32.xlu0 %v1316, 35
      %v1397 = vpop.permute.xlu0 %1396
      %1398 = vrot.lane.b32.xlu0 %v1317, 35
      %v1399 = vpop.permute.xlu0 %1398
      %1400 = vrot.lane.b32.xlu0 %v1318, 35
      %v1401 = vpop.permute.xlu0 %1400
      %1402 = vrot.lane.b32.xlu0 %v1319, 35
      %v1403 = vpop.permute.xlu0 %1402
      %vm1432 = vcmask 326936
      %1433 = vst.msk [vmem:[#allocation2] sm:$0xff] %vm1432, %v1349
      %vm1434 = vcmask 324888
      %1435 = vst.msk [vmem:[#allocation2 + $0x8] sm:$0x3f] %vm1434, %v1351
      %1436 = vst.msk [vmem:[#allocation2 + $0x10] sm:$0xff] %vm1432, %v1353
      %1437 = vst.msk [vmem:[#allocation2 + $0x18] sm:$0x3f] %vm1434, %v1355
      %1438 = vst.msk [vmem:[#allocation2 + $0x20] sm:$0xff] %vm1432, %v1357
      %1439 = vst.msk [vmem:[#allocation2 + $0x28] sm:$0x3f] %vm1434, %v1359
      %1440 = vst.msk [vmem:[#allocation2 + $0x30] sm:$0xff] %vm1432, %v1361
      %1441 = vst.msk [vmem:[#allocation2 + $0x38] sm:$0x3f] %vm1434, %v1363
      %1442 = vst.msk [vmem:[#allocation2 + $0x40] sm:$0xff] %vm1432, %v1365
      %1443 = vst.msk [vmem:[#allocation2 + $0x48] sm:$0x3f] %vm1434, %v1367
      %1444 = vst.msk [vmem:[#allocation2 + $0x50] sm:$0xff] %vm1432, %v1369
      %1445 = vst.msk [vmem:[#allocation2 + $0x58] sm:$0x3f] %vm1434, %v1371
      %1446 = vst.msk [vmem:[#allocation2 + $0x60] sm:$0xff] %vm1432, %v1373
      %1447 = vst.msk [vmem:[#allocation2 + $0x68] sm:$0x3f] %vm1434, %v1375
      %1448 = vst.msk [vmem:[#allocation2 + $0x70] sm:$0xff] %vm1432, %v1377
      %1449 = vst.msk [vmem:[#allocation2 + $0x78] sm:$0x3f] %vm1434, %v1379
      %1450 = vst.msk [vmem:[#allocation2 + $0x80] sm:$0xff] %vm1432, %v1381
      %1451 = vst.msk [vmem:[#allocation2 + $0x88] sm:$0x3f] %vm1434, %v1383
      %1452 = vst.msk [vmem:[#allocation2 + $0x90] sm:$0xff] %vm1432, %v1385
      %1453 = vst.msk [vmem:[#allocation2 + $0x98] sm:$0x3f] %vm1434, %v1387
      %1454 = vst.msk [vmem:[#allocation2 + $0xa0] sm:$0xff] %vm1432, %v1389
      %1455 = vst.msk [vmem:[#allocation2 + $0xa8] sm:$0x3f] %vm1434, %v1391
      %1456 = vst.msk [vmem:[#allocation2 + $0xb0] sm:$0xff] %vm1432, %v1393
      %1457 = vst.msk [vmem:[#allocation2 + $0xb8] sm:$0x3f] %vm1434, %v1395
      %1458 = vst.msk [vmem:[#allocation2 + $0xc0] sm:$0xff] %vm1432, %v1397
      %1459 = vst.msk [vmem:[#allocation2 + $0xc8] sm:$0x3f] %vm1434, %v1399
      %1460 = vst.msk [vmem:[#allocation2 + $0xd0] sm:$0xff] %vm1432, %v1401
      %1461 = vst.msk [vmem:[#allocation2 + $0xd8] sm:$0x3f] %vm1434, %v1403
      %v1462 = vld [vmem:[%s1121 + $0x2] sm:$0xff]
      %v1463 = vld [vmem:[%s1121 + $0xa] sm:$0x3f]
      %v1464 = vld [vmem:[%s1121 + $0x12] sm:$0xff]
      %v1465 = vld [vmem:[%s1121 + $0x1a] sm:$0x3f]
      %v1466 = vld [vmem:[%s1121 + $0x22] sm:$0xff]
      %v1467 = vld [vmem:[%s1121 + $0x2a] sm:$0x3f]
      %v1468 = vld [vmem:[%s1121 + $0x32] sm:$0xff]
      %v1469 = vld [vmem:[%s1121 + $0x3a] sm:$0x3f]
      %v1470 = vld [vmem:[%s1121 + $0x42] sm:$0xff]
      %v1471 = vld [vmem:[%s1121 + $0x4a] sm:$0x3f]
      %v1472 = vld [vmem:[%s1121 + $0x52] sm:$0xff]
      %v1473 = vld [vmem:[%s1121 + $0x5a] sm:$0x3f]
      %v1474 = vld [vmem:[%s1121 + $0x62] sm:$0xff]
      %v1475 = vld [vmem:[%s1121 + $0x6a] sm:$0x3f]
      %v1476 = vld [vmem:[%s1121 + $0x72] sm:$0xff]
      %v1477 = vld [vmem:[%s1121 + $0x7a] sm:$0x3f]
      %v1478 = vld [vmem:[%s1121 + $0x82] sm:$0xff]
      %v1479 = vld [vmem:[%s1121 + $0x8a] sm:$0x3f]
      %v1480 = vld [vmem:[%s1121 + $0x92] sm:$0xff]
      %v1481 = vld [vmem:[%s1121 + $0x9a] sm:$0x3f]
      %v1482 = vld [vmem:[%s1121 + $0xa2] sm:$0xff]
      %v1483 = vld [vmem:[%s1121 + $0xaa] sm:$0x3f]
      %v1484 = vld [vmem:[%s1121 + $0xb2] sm:$0xff]
      %v1485 = vld [vmem:[%s1121 + $0xba] sm:$0x3f]
      %v1486 = vld [vmem:[%s1121 + $0xc2] sm:$0xff]
      %v1487 = vld [vmem:[%s1121 + $0xca] sm:$0x3f]
      %v1488 = vld [vmem:[%s1121 + $0xd2] sm:$0xff]
      %v1489 = vld [vmem:[%s1121 + $0xda] sm:$0x3f]
      %1518 = vrot.lane.b32.xlu0 %v1462, 40
      %v1519 = vpop.permute.xlu0 %1518
      %1520 = vrot.lane.b32.xlu0 %v1463, 40
      %v1521 = vpop.permute.xlu0 %1520
      %1522 = vrot.lane.b32.xlu0 %v1464, 40
      %v1523 = vpop.permute.xlu0 %1522
      %1524 = vrot.lane.b32.xlu0 %v1465, 40
      %v1525 = vpop.permute.xlu0 %1524
      %1526 = vrot.lane.b32.xlu0 %v1466, 40
      %v1527 = vpop.permute.xlu0 %1526
      %1528 = vrot.lane.b32.xlu0 %v1467, 40
      %v1529 = vpop.permute.xlu0 %1528
      %1530 = vrot.lane.b32.xlu0 %v1468, 40
      %v1531 = vpop.permute.xlu0 %1530
      %1532 = vrot.lane.b32.xlu0 %v1469, 40
      %v1533 = vpop.permute.xlu0 %1532
      %1534 = vrot.lane.b32.xlu0 %v1470, 40
      %v1535 = vpop.permute.xlu0 %1534
      %1536 = vrot.lane.b32.xlu0 %v1471, 40
      %v1537 = vpop.permute.xlu0 %1536
      %1538 = vrot.lane.b32.xlu0 %v1472, 40
      %v1539 = vpop.permute.xlu0 %1538
      %1540 = vrot.lane.b32.xlu0 %v1473, 40
      %v1541 = vpop.permute.xlu0 %1540
      %1542 = vrot.lane.b32.xlu0 %v1474, 40
      %v1543 = vpop.permute.xlu0 %1542
      %1544 = vrot.lane.b32.xlu0 %v1475, 40
      %v1545 = vpop.permute.xlu0 %1544
      %1546 = vrot.lane.b32.xlu0 %v1476, 40
      %v1547 = vpop.permute.xlu0 %1546
      %1548 = vrot.lane.b32.xlu0 %v1477, 40
      %v1549 = vpop.permute.xlu0 %1548
      %1550 = vrot.lane.b32.xlu0 %v1478, 40
      %v1551 = vpop.permute.xlu0 %1550
      %1552 = vrot.lane.b32.xlu0 %v1479, 40
      %v1553 = vpop.permute.xlu0 %1552
      %1554 = vrot.lane.b32.xlu0 %v1480, 40
      %v1555 = vpop.permute.xlu0 %1554
      %1556 = vrot.lane.b32.xlu0 %v1481, 40
      %v1557 = vpop.permute.xlu0 %1556
      %1558 = vrot.lane.b32.xlu0 %v1482, 40
      %v1559 = vpop.permute.xlu0 %1558
      %1560 = vrot.lane.b32.xlu0 %v1483, 40
      %v1561 = vpop.permute.xlu0 %1560
      %1562 = vrot.lane.b32.xlu0 %v1484, 40
      %v1563 = vpop.permute.xlu0 %1562
      %1564 = vrot.lane.b32.xlu0 %v1485, 40
      %v1565 = vpop.permute.xlu0 %1564
      %1566 = vrot.lane.b32.xlu0 %v1486, 40
      %v1567 = vpop.permute.xlu0 %1566
      %1568 = vrot.lane.b32.xlu0 %v1487, 40
      %v1569 = vpop.permute.xlu0 %1568
      %1570 = vrot.lane.b32.xlu0 %v1488, 40
      %v1571 = vpop.permute.xlu0 %1570
      %1572 = vrot.lane.b32.xlu0 %v1489, 40
      %v1573 = vpop.permute.xlu0 %1572
      %vm1602 = vcmask 367936
      %1603 = vst.msk [vmem:[#allocation2] sm:$0xff] %vm1602, %v1519
      %vm1604 = vcmask 365888
      %1605 = vst.msk [vmem:[#allocation2 + $0x8] sm:$0x3f] %vm1604, %v1521
      %1606 = vst.msk [vmem:[#allocation2 + $0x10] sm:$0xff] %vm1602, %v1523
      %1607 = vst.msk [vmem:[#allocation2 + $0x18] sm:$0x3f] %vm1604, %v1525
      %1608 = vst.msk [vmem:[#allocation2 + $0x20] sm:$0xff] %vm1602, %v1527
      %1609 = vst.msk [vmem:[#allocation2 + $0x28] sm:$0x3f] %vm1604, %v1529
      %1610 = vst.msk [vmem:[#allocation2 + $0x30] sm:$0xff] %vm1602, %v1531
      %1611 = vst.msk [vmem:[#allocation2 + $0x38] sm:$0x3f] %vm1604, %v1533
      %1612 = vst.msk [vmem:[#allocation2 + $0x40] sm:$0xff] %vm1602, %v1535
      %1613 = vst.msk [vmem:[#allocation2 + $0x48] sm:$0x3f] %vm1604, %v1537
      %1614 = vst.msk [vmem:[#allocation2 + $0x50] sm:$0xff] %vm1602, %v1539
      %1615 = vst.msk [vmem:[#allocation2 + $0x58] sm:$0x3f] %vm1604, %v1541
      %1616 = vst.msk [vmem:[#allocation2 + $0x60] sm:$0xff] %vm1602, %v1543
      %1617 = vst.msk [vmem:[#allocation2 + $0x68] sm:$0x3f] %vm1604, %v1545
      %1618 = vst.msk [vmem:[#allocation2 + $0x70] sm:$0xff] %vm1602, %v1547
      %1619 = vst.msk [vmem:[#allocation2 + $0x78] sm:$0x3f] %vm1604, %v1549
      %1620 = vst.msk [vmem:[#allocation2 + $0x80] sm:$0xff] %vm1602, %v1551
      %1621 = vst.msk [vmem:[#allocation2 + $0x88] sm:$0x3f] %vm1604, %v1553
      %1622 = vst.msk [vmem:[#allocation2 + $0x90] sm:$0xff] %vm1602, %v1555
      %1623 = vst.msk [vmem:[#allocation2 + $0x98] sm:$0x3f] %vm1604, %v1557
      %1624 = vst.msk [vmem:[#allocation2 + $0xa0] sm:$0xff] %vm1602, %v1559
      %1625 = vst.msk [vmem:[#allocation2 + $0xa8] sm:$0x3f] %vm1604, %v1561
      %1626 = vst.msk [vmem:[#allocation2 + $0xb0] sm:$0xff] %vm1602, %v1563
      %1627 = vst.msk [vmem:[#allocation2 + $0xb8] sm:$0x3f] %vm1604, %v1565
      %1628 = vst.msk [vmem:[#allocation2 + $0xc0] sm:$0xff] %vm1602, %v1567
      %1629 = vst.msk [vmem:[#allocation2 + $0xc8] sm:$0x3f] %vm1604, %v1569
      %1630 = vst.msk [vmem:[#allocation2 + $0xd0] sm:$0xff] %vm1602, %v1571
      %1631 = vst.msk [vmem:[#allocation2 + $0xd8] sm:$0x3f] %vm1604, %v1573
      %v1632 = vld [vmem:[#allocation2] sm:$0xff]
      %v1633 = vld [vmem:[#allocation2 + $0x8] sm:$0x3f]
      %v1634 = vld [vmem:[#allocation2 + $0x10] sm:$0xff]
      %v1635 = vld [vmem:[#allocation2 + $0x18] sm:$0x3f]
      %v1636 = vld [vmem:[#allocation2 + $0x20] sm:$0xff]
      %v1637 = vld [vmem:[#allocation2 + $0x28] sm:$0x3f]
      %v1638 = vld [vmem:[#allocation2 + $0x30] sm:$0xff]
      %v1639 = vld [vmem:[#allocation2 + $0x38] sm:$0x3f]
      %v1640 = vld [vmem:[#allocation2 + $0x40] sm:$0xff]
      %v1641 = vld [vmem:[#allocation2 + $0x48] sm:$0x3f]
      %v1642 = vld [vmem:[#allocation2 + $0x50] sm:$0xff]
      %v1643 = vld [vmem:[#allocation2 + $0x58] sm:$0x3f]
      %v1644 = vld [vmem:[#allocation2 + $0x60] sm:$0xff]
      %v1645 = vld [vmem:[#allocation2 + $0x68] sm:$0x3f]
      %v1646 = vld [vmem:[#allocation2 + $0x70] sm:$0xff]
      %v1647 = vld [vmem:[#allocation2 + $0x78] sm:$0x3f]
      %v1648 = vld [vmem:[#allocation2 + $0x80] sm:$0xff]
      %v1649 = vld [vmem:[#allocation2 + $0x88] sm:$0x3f]
      %v1650 = vld [vmem:[#allocation2 + $0x90] sm:$0xff]
      %v1651 = vld [vmem:[#allocation2 + $0x98] sm:$0x3f]
      %v1652 = vld [vmem:[#allocation2 + $0xa0] sm:$0xff]
      %v1653 = vld [vmem:[#allocation2 + $0xa8] sm:$0x3f]
      %v1654 = vld [vmem:[#allocation2 + $0xb0] sm:$0xff]
      %v1655 = vld [vmem:[#allocation2 + $0xb8] sm:$0x3f]
      %v1656 = vld [vmem:[#allocation2 + $0xc0] sm:$0xff]
      %v1657 = vld [vmem:[#allocation2 + $0xc8] sm:$0x3f]
      %v1658 = vld [vmem:[#allocation2 + $0xd0] sm:$0xff]
      %v1659 = vld [vmem:[#allocation2 + $0xd8] sm:$0x3f]
      %v1688 = vcombine.high %v1632, %v1632
      %v1690 = vunpack.c.l.s4 1983009808
      %v1691 = vunpack.c.0.s8 %v1690
      %v1692 = vlaneseq
      %v1693 = vshrl.u32 %v1692, 7
      %v1694 = vsub.s32 %v1691, %v1693
      %v1695 = vrot.slane %v1632, %v1694
      %v1697 = vunpack.c.l.s4 1983009808
      %v1698 = vunpack.c.0.s8 %v1697
      %v1699 = vlaneseq
      %v1700 = vshrl.u32 %v1699, 7
      %v1701 = vsub.s32 %v1698, %v1700
      %v1702 = vrot.slane %v1688, %v1701
      %v1703 = vcombine.high %v1695, %v1695
      %v1704 = vcombine.high %v1702, %v1702
      %v1705 = vcombine.high %v1633, %v1633
      %v1707 = vunpack.c.l.s4 1983009808
      %v1708 = vunpack.c.0.s8 %v1707
      %v1709 = vlaneseq
      %v1710 = vshrl.u32 %v1709, 7
      %v1711 = vsub.s32 %v1708, %v1710
      %v1712 = vrot.slane %v1633, %v1711
      %v1714 = vunpack.c.l.s4 1983009808
      %v1715 = vunpack.c.0.s8 %v1714
      %v1716 = vlaneseq
      %v1717 = vshrl.u32 %v1716, 7
      %v1718 = vsub.s32 %v1715, %v1717
      %v1719 = vrot.slane %v1705, %v1718
      %v1720 = vcombine.high %v1712, %v1712
      %v1721 = vcombine.high %v1634, %v1634
      %v1723 = vunpack.c.l.s4 1983009808
      %v1724 = vunpack.c.0.s8 %v1723
      %v1725 = vlaneseq
      %v1726 = vshrl.u32 %v1725, 7
      %v1727 = vsub.s32 %v1724, %v1726
      %v1728 = vrot.slane %v1634, %v1727
      %v1730 = vunpack.c.l.s4 1983009808
      %v1731 = vunpack.c.0.s8 %v1730
      %v1732 = vlaneseq
      %v1733 = vshrl.u32 %v1732, 7
      %v1734 = vsub.s32 %v1731, %v1733
      %v1735 = vrot.slane %v1721, %v1734
      %v1736 = vcombine.high %v1728, %v1728
      %v1737 = vcombine.high %v1735, %v1735
      %v1738 = vcombine.high %v1635, %v1635
      %v1740 = vunpack.c.l.s4 1983009808
      %v1741 = vunpack.c.0.s8 %v1740
      %v1742 = vlaneseq
      %v1743 = vshrl.u32 %v1742, 7
      %v1744 = vsub.s32 %v1741, %v1743
      %v1745 = vrot.slane %v1635, %v1744
      %v1747 = vunpack.c.l.s4 1983009808
      %v1748 = vunpack.c.0.s8 %v1747
      %v1749 = vlaneseq
      %v1750 = vshrl.u32 %v1749, 7
      %v1751 = vsub.s32 %v1748, %v1750
      %v1752 = vrot.slane %v1738, %v1751
      %v1753 = vcombine.high %v1745, %v1745
      %v1754 = vcombine.high %v1636, %v1636
      %v1756 = vunpack.c.l.s4 1983009808
      %v1757 = vunpack.c.0.s8 %v1756
      %v1758 = vlaneseq
      %v1759 = vshrl.u32 %v1758, 7
      %v1760 = vsub.s32 %v1757, %v1759
      %v1761 = vrot.slane %v1636, %v1760
      %v1763 = vunpack.c.l.s4 1983009808
      %v1764 = vunpack.c.0.s8 %v1763
      %v1765 = vlaneseq
      %v1766 = vshrl.u32 %v1765, 7
      %v1767 = vsub.s32 %v1764, %v1766
      %v1768 = vrot.slane %v1754, %v1767
      %v1769 = vcombine.high %v1761, %v1761
      %v1770 = vcombine.high %v1768, %v1768
      %v1771 = vcombine.high %v1637, %v1637
      %v1773 = vunpack.c.l.s4 1983009808
      %v1774 = vunpack.c.0.s8 %v1773
      %v1775 = vlaneseq
      %v1776 = vshrl.u32 %v1775, 7
      %v1777 = vsub.s32 %v1774, %v1776
      %v1778 = vrot.slane %v1637, %v1777
      %v1780 = vunpack.c.l.s4 1983009808
      %v1781 = vunpack.c.0.s8 %v1780
      %v1782 = vlaneseq
      %v1783 = vshrl.u32 %v1782, 7
      %v1784 = vsub.s32 %v1781, %v1783
      %v1785 = vrot.slane %v1771, %v1784
      %v1786 = vcombine.high %v1778, %v1778
      %v1787 = vcombine.high %v1638, %v1638
      %v1789 = vunpack.c.l.s4 1983009808
      %v1790 = vunpack.c.0.s8 %v1789
      %v1791 = vlaneseq
      %v1792 = vshrl.u32 %v1791, 7
      %v1793 = vsub.s32 %v1790, %v1792
      %v1794 = vrot.slane %v1638, %v1793
      %v1796 = vunpack.c.l.s4 1983009808
      %v1797 = vunpack.c.0.s8 %v1796
      %v1798 = vlaneseq
      %v1799 = vshrl.u32 %v1798, 7
      %v1800 = vsub.s32 %v1797, %v1799
      %v1801 = vrot.slane %v1787, %v1800
      %v1802 = vcombine.high %v1794, %v1794
      %v1803 = vcombine.high %v1801, %v1801
      %v1804 = vcombine.high %v1639, %v1639
      %v1806 = vunpack.c.l.s4 1983009808
      %v1807 = vunpack.c.0.s8 %v1806
      %v1808 = vlaneseq
      %v1809 = vshrl.u32 %v1808, 7
      %v1810 = vsub.s32 %v1807, %v1809
      %v1811 = vrot.slane %v1639, %v1810
      %v1813 = vunpack.c.l.s4 1983009808
      %v1814 = vunpack.c.0.s8 %v1813
      %v1815 = vlaneseq
      %v1816 = vshrl.u32 %v1815, 7
      %v1817 = vsub.s32 %v1814, %v1816
      %v1818 = vrot.slane %v1804, %v1817
      %v1819 = vcombine.high %v1811, %v1811
      %v1820 = vcombine.high %v1640, %v1640
      %v1822 = vunpack.c.l.s4 1983009808
      %v1823 = vunpack.c.0.s8 %v1822
      %v1824 = vlaneseq
      %v1825 = vshrl.u32 %v1824, 7
      %v1826 = vsub.s32 %v1823, %v1825
      %v1827 = vrot.slane %v1640, %v1826
      %v1829 = vunpack.c.l.s4 1983009808
      %v1830 = vunpack.c.0.s8 %v1829
      %v1831 = vlaneseq
      %v1832 = vshrl.u32 %v1831, 7
      %v1833 = vsub.s32 %v1830, %v1832
      %v1834 = vrot.slane %v1820, %v1833
      %v1835 = vcombine.high %v1827, %v1827
      %v1836 = vcombine.high %v1834, %v1834
      %v1837 = vcombine.high %v1641, %v1641
      %v1839 = vunpack.c.l.s4 1983009808
      %v1840 = vunpack.c.0.s8 %v1839
      %v1841 = vlaneseq
      %v1842 = vshrl.u32 %v1841, 7
      %v1843 = vsub.s32 %v1840, %v1842
      %v1844 = vrot.slane %v1641, %v1843
      %v1846 = vunpack.c.l.s4 1983009808
      %v1847 = vunpack.c.0.s8 %v1846
      %v1848 = vlaneseq
      %v1849 = vshrl.u32 %v1848, 7
      %v1850 = vsub.s32 %v1847, %v1849
      %v1851 = vrot.slane %v1837, %v1850
      %v1852 = vcombine.high %v1844, %v1844
      %v1853 = vcombine.high %v1642, %v1642
      %v1855 = vunpack.c.l.s4 1983009808
      %v1856 = vunpack.c.0.s8 %v1855
      %v1857 = vlaneseq
      %v1858 = vshrl.u32 %v1857, 7
      %v1859 = vsub.s32 %v1856, %v1858
      %v1860 = vrot.slane %v1642, %v1859
      %v1862 = vunpack.c.l.s4 1983009808
      %v1863 = vunpack.c.0.s8 %v1862
      %v1864 = vlaneseq
      %v1865 = vshrl.u32 %v1864, 7
      %v1866 = vsub.s32 %v1863, %v1865
      %v1867 = vrot.slane %v1853, %v1866
      %v1868 = vcombine.high %v1860, %v1860
      %v1869 = vcombine.high %v1867, %v1867
      %v1870 = vcombine.high %v1643, %v1643
      %v1872 = vunpack.c.l.s4 1983009808
      %v1873 = vunpack.c.0.s8 %v1872
      %v1874 = vlaneseq
      %v1875 = vshrl.u32 %v1874, 7
      %v1876 = vsub.s32 %v1873, %v1875
      %v1877 = vrot.slane %v1643, %v1876
      %v1879 = vunpack.c.l.s4 1983009808
      %v1880 = vunpack.c.0.s8 %v1879
      %v1881 = vlaneseq
      %v1882 = vshrl.u32 %v1881, 7
      %v1883 = vsub.s32 %v1880, %v1882
      %v1884 = vrot.slane %v1870, %v1883
      %v1885 = vcombine.high %v1877, %v1877
      %v1886 = vcombine.high %v1644, %v1644
      %v1888 = vunpack.c.l.s4 1983009808
      %v1889 = vunpack.c.0.s8 %v1888
      %v1890 = vlaneseq
      %v1891 = vshrl.u32 %v1890, 7
      %v1892 = vsub.s32 %v1889, %v1891
      %v1893 = vrot.slane %v1644, %v1892
      %v1895 = vunpack.c.l.s4 1983009808
      %v1896 = vunpack.c.0.s8 %v1895
      %v1897 = vlaneseq
      %v1898 = vshrl.u32 %v1897, 7
      %v1899 = vsub.s32 %v1896, %v1898
      %v1900 = vrot.slane %v1886, %v1899
      %v1901 = vcombine.high %v1893, %v1893
      %v1902 = vcombine.high %v1900, %v1900
      %v1903 = vcombine.high %v1645, %v1645
      %v1905 = vunpack.c.l.s4 1983009808
      %v1906 = vunpack.c.0.s8 %v1905
      %v1907 = vlaneseq
      %v1908 = vshrl.u32 %v1907, 7
      %v1909 = vsub.s32 %v1906, %v1908
      %v1910 = vrot.slane %v1645, %v1909
      %v1912 = vunpack.c.l.s4 1983009808
      %v1913 = vunpack.c.0.s8 %v1912
      %v1914 = vlaneseq
      %v1915 = vshrl.u32 %v1914, 7
      %v1916 = vsub.s32 %v1913, %v1915
      %v1917 = vrot.slane %v1903, %v1916
      %v1918 = vcombine.high %v1910, %v1910
      %v1919 = vcombine.high %v1646, %v1646
      %v1921 = vunpack.c.l.s4 1983009808
      %v1922 = vunpack.c.0.s8 %v1921
      %v1923 = vlaneseq
      %v1924 = vshrl.u32 %v1923, 7
      %v1925 = vsub.s32 %v1922, %v1924
      %v1926 = vrot.slane %v1646, %v1925
      %v1928 = vunpack.c.l.s4 1983009808
      %v1929 = vunpack.c.0.s8 %v1928
      %v1930 = vlaneseq
      %v1931 = vshrl.u32 %v1930, 7
      %v1932 = vsub.s32 %v1929, %v1931
      %v1933 = vrot.slane %v1919, %v1932
      %v1934 = vcombine.high %v1926, %v1926
      %v1935 = vcombine.high %v1933, %v1933
      %v1936 = vcombine.high %v1647, %v1647
      %v1938 = vunpack.c.l.s4 1983009808
      %v1939 = vunpack.c.0.s8 %v1938
      %v1940 = vlaneseq
      %v1941 = vshrl.u32 %v1940, 7
      %v1942 = vsub.s32 %v1939, %v1941
      %v1943 = vrot.slane %v1647, %v1942
      %v1945 = vunpack.c.l.s4 1983009808
      %v1946 = vunpack.c.0.s8 %v1945
      %v1947 = vlaneseq
      %v1948 = vshrl.u32 %v1947, 7
      %v1949 = vsub.s32 %v1946, %v1948
      %v1950 = vrot.slane %v1936, %v1949
      %v1951 = vcombine.high %v1943, %v1943
      %v1952 = vcombine.high %v1648, %v1648
      %v1954 = vunpack.c.l.s4 1983009808
      %v1955 = vunpack.c.0.s8 %v1954
      %v1956 = vlaneseq
      %v1957 = vshrl.u32 %v1956, 7
      %v1958 = vsub.s32 %v1955, %v1957
      %v1959 = vrot.slane %v1648, %v1958
      %v1961 = vunpack.c.l.s4 1983009808
      %v1962 = vunpack.c.0.s8 %v1961
      %v1963 = vlaneseq
      %v1964 = vshrl.u32 %v1963, 7
      %v1965 = vsub.s32 %v1962, %v1964
      %v1966 = vrot.slane %v1952, %v1965
      %v1967 = vcombine.high %v1959, %v1959
      %v1968 = vcombine.high %v1966, %v1966
      %v1969 = vcombine.high %v1649, %v1649
      %v1971 = vunpack.c.l.s4 1983009808
      %v1972 = vunpack.c.0.s8 %v1971
      %v1973 = vlaneseq
      %v1974 = vshrl.u32 %v1973, 7
      %v1975 = vsub.s32 %v1972, %v1974
      %v1976 = vrot.slane %v1649, %v1975
      %v1978 = vunpack.c.l.s4 1983009808
      %v1979 = vunpack.c.0.s8 %v1978
      %v1980 = vlaneseq
      %v1981 = vshrl.u32 %v1980, 7
      %v1982 = vsub.s32 %v1979, %v1981
      %v1983 = vrot.slane %v1969, %v1982
      %v1984 = vcombine.high %v1976, %v1976
      %v1985 = vcombine.high %v1650, %v1650
      %v1987 = vunpack.c.l.s4 1983009808
      %v1988 = vunpack.c.0.s8 %v1987
      %v1989 = vlaneseq
      %v1990 = vshrl.u32 %v1989, 7
      %v1991 = vsub.s32 %v1988, %v1990
      %v1992 = vrot.slane %v1650, %v1991
      %v1994 = vunpack.c.l.s4 1983009808
      %v1995 = vunpack.c.0.s8 %v1994
      %v1996 = vlaneseq
      %v1997 = vshrl.u32 %v1996, 7
      %v1998 = vsub.s32 %v1995, %v1997
      %v1999 = vrot.slane %v1985, %v1998
      %v2000 = vcombine.high %v1992, %v1992
      %v2001 = vcombine.high %v1999, %v1999
      %v2002 = vcombine.high %v1651, %v1651
      %v2004 = vunpack.c.l.s4 1983009808
      %v2005 = vunpack.c.0.s8 %v2004
      %v2006 = vlaneseq
      %v2007 = vshrl.u32 %v2006, 7
      %v2008 = vsub.s32 %v2005, %v2007
      %v2009 = vrot.slane %v1651, %v2008
      %v2011 = vunpack.c.l.s4 1983009808
      %v2012 = vunpack.c.0.s8 %v2011
      %v2013 = vlaneseq
      %v2014 = vshrl.u32 %v2013, 7
      %v2015 = vsub.s32 %v2012, %v2014
      %v2016 = vrot.slane %v2002, %v2015
      %v2017 = vcombine.high %v2009, %v2009
      %v2018 = vcombine.high %v1652, %v1652
      %v2020 = vunpack.c.l.s4 1983009808
      %v2021 = vunpack.c.0.s8 %v2020
      %v2022 = vlaneseq
      %v2023 = vshrl.u32 %v2022, 7
      %v2024 = vsub.s32 %v2021, %v2023
      %v2025 = vrot.slane %v1652, %v2024
      %v2027 = vunpack.c.l.s4 1983009808
      %v2028 = vunpack.c.0.s8 %v2027
      %v2029 = vlaneseq
      %v2030 = vshrl.u32 %v2029, 7
      %v2031 = vsub.s32 %v2028, %v2030
      %v2032 = vrot.slane %v2018, %v2031
      %v2033 = vcombine.high %v2025, %v2025
      %v2034 = vcombine.high %v2032, %v2032
      %v2035 = vcombine.high %v1653, %v1653
      %v2037 = vunpack.c.l.s4 1983009808
      %v2038 = vunpack.c.0.s8 %v2037
      %v2039 = vlaneseq
      %v2040 = vshrl.u32 %v2039, 7
      %v2041 = vsub.s32 %v2038, %v2040
      %v2042 = vrot.slane %v1653, %v2041
      %v2044 = vunpack.c.l.s4 1983009808
      %v2045 = vunpack.c.0.s8 %v2044
      %v2046 = vlaneseq
      %v2047 = vshrl.u32 %v2046, 7
      %v2048 = vsub.s32 %v2045, %v2047
      %v2049 = vrot.slane %v2035, %v2048
      %v2050 = vcombine.high %v2042, %v2042
      %v2051 = vcombine.high %v1654, %v1654
      %v2053 = vunpack.c.l.s4 1983009808
      %v2054 = vunpack.c.0.s8 %v2053
      %v2055 = vlaneseq
      %v2056 = vshrl.u32 %v2055, 7
      %v2057 = vsub.s32 %v2054, %v2056
      %v2058 = vrot.slane %v1654, %v2057
      %v2060 = vunpack.c.l.s4 1983009808
      %v2061 = vunpack.c.0.s8 %v2060
      %v2062 = vlaneseq
      %v2063 = vshrl.u32 %v2062, 7
      %v2064 = vsub.s32 %v2061, %v2063
      %v2065 = vrot.slane %v2051, %v2064
      %v2066 = vcombine.high %v2058, %v2058
      %v2067 = vcombine.high %v2065, %v2065
      %v2068 = vcombine.high %v1655, %v1655
      %v2070 = vunpack.c.l.s4 1983009808
      %v2071 = vunpack.c.0.s8 %v2070
      %v2072 = vlaneseq
      %v2073 = vshrl.u32 %v2072, 7
      %v2074 = vsub.s32 %v2071, %v2073
      %v2075 = vrot.slane %v1655, %v2074
      %v2077 = vunpack.c.l.s4 1983009808
      %v2078 = vunpack.c.0.s8 %v2077
      %v2079 = vlaneseq
      %v2080 = vshrl.u32 %v2079, 7
      %v2081 = vsub.s32 %v2078, %v2080
      %v2082 = vrot.slane %v2068, %v2081
      %v2083 = vcombine.high %v2075, %v2075
      %v2084 = vcombine.high %v1656, %v1656
      %v2086 = vunpack.c.l.s4 1983009808
      %v2087 = vunpack.c.0.s8 %v2086
      %v2088 = vlaneseq
      %v2089 = vshrl.u32 %v2088, 7
      %v2090 = vsub.s32 %v2087, %v2089
      %v2091 = vrot.slane %v1656, %v2090
      %v2093 = vunpack.c.l.s4 1983009808
      %v2094 = vunpack.c.0.s8 %v2093
      %v2095 = vlaneseq
      %v2096 = vshrl.u32 %v2095, 7
      %v2097 = vsub.s32 %v2094, %v2096
      %v2098 = vrot.slane %v2084, %v2097
      %v2099 = vcombine.high %v2091, %v2091
      %v2100 = vcombine.high %v2098, %v2098
      %v2101 = vcombine.high %v1657, %v1657
      %v2103 = vunpack.c.l.s4 1983009808
      %v2104 = vunpack.c.0.s8 %v2103
      %v2105 = vlaneseq
      %v2106 = vshrl.u32 %v2105, 7
      %v2107 = vsub.s32 %v2104, %v2106
      %v2108 = vrot.slane %v1657, %v2107
      %v2110 = vunpack.c.l.s4 1983009808
      %v2111 = vunpack.c.0.s8 %v2110
      %v2112 = vlaneseq
      %v2113 = vshrl.u32 %v2112, 7
      %v2114 = vsub.s32 %v2111, %v2113
      %v2115 = vrot.slane %v2101, %v2114
      %v2116 = vcombine.high %v2108, %v2108
      %v2117 = vcombine.high %v1658, %v1658
      %v2119 = vunpack.c.l.s4 1983009808
      %v2120 = vunpack.c.0.s8 %v2119
      %v2121 = vlaneseq
      %v2122 = vshrl.u32 %v2121, 7
      %v2123 = vsub.s32 %v2120, %v2122
      %v2124 = vrot.slane %v1658, %v2123
      %v2126 = vunpack.c.l.s4 1983009808
      %v2127 = vunpack.c.0.s8 %v2126
      %v2128 = vlaneseq
      %v2129 = vshrl.u32 %v2128, 7
      %v2130 = vsub.s32 %v2127, %v2129
      %v2131 = vrot.slane %v2117, %v2130
      %v2132 = vcombine.high %v2124, %v2124
      %v2133 = vcombine.high %v2131, %v2131
      %v2134 = vcombine.high %v1659, %v1659
      %v2136 = vunpack.c.l.s4 1983009808
      %v2137 = vunpack.c.0.s8 %v2136
      %v2138 = vlaneseq
      %v2139 = vshrl.u32 %v2138, 7
      %v2140 = vsub.s32 %v2137, %v2139
      %v2141 = vrot.slane %v1659, %v2140
      %v2143 = vunpack.c.l.s4 1983009808
      %v2144 = vunpack.c.0.s8 %v2143
      %v2145 = vlaneseq
      %v2146 = vshrl.u32 %v2145, 7
      %v2147 = vsub.s32 %v2144, %v2146
      %v2148 = vrot.slane %v2134, %v2147
      %v2149 = vcombine.high %v2141, %v2141
      %v2150 = vcombine.low %v1695, %v1703
      %v2151 = vcombine.low %v1702, %v1704
      %v2153 = vunpack.c.l.s4 1983009808
      %v2154 = vunpack.c.0.s8 %v2153
      %v2155 = vlaneseq
      %v2156 = vshrl.u32 %v2155, 7
      %v2157 = vsub.s32 %v2154, %v2156
      %v2158 = vrot.slane %v2150, %v2157
      %v2160 = vunpack.c.l.s4 1983009808
      %v2161 = vunpack.c.0.s8 %v2160
      %v2162 = vlaneseq
      %v2163 = vshrl.u32 %v2162, 7
      %v2164 = vsub.s32 %v2161, %v2163
      %v2165 = vrot.slane %v2151, %v2164
      %v2166 = vcombine.low %v2158, %v2165
      %v2167 = vcombine.low %v1712, %v1720
      %v2168 = vcombine.low %v1719, %v1728
      %v2170 = vunpack.c.l.s4 1983009808
      %v2171 = vunpack.c.0.s8 %v2170
      %v2172 = vlaneseq
      %v2173 = vshrl.u32 %v2172, 7
      %v2174 = vsub.s32 %v2171, %v2173
      %v2175 = vrot.slane %v2167, %v2174
      %v2177 = vunpack.c.l.s4 1983009808
      %v2178 = vunpack.c.0.s8 %v2177
      %v2179 = vlaneseq
      %v2180 = vshrl.u32 %v2179, 7
      %v2181 = vsub.s32 %v2178, %v2180
      %v2182 = vrot.slane %v2168, %v2181
      %v2183 = vcombine.low %v2175, %v2182
      %v2184 = vcombine.low %v1736, %v1735
      %v2185 = vcombine.low %v1737, %v1745
      %v2187 = vunpack.c.l.s4 1983009808
      %v2188 = vunpack.c.0.s8 %v2187
      %v2189 = vlaneseq
      %v2190 = vshrl.u32 %v2189, 7
      %v2191 = vsub.s32 %v2188, %v2190
      %v2192 = vrot.slane %v2184, %v2191
      %v2194 = vunpack.c.l.s4 1983009808
      %v2195 = vunpack.c.0.s8 %v2194
      %v2196 = vlaneseq
      %v2197 = vshrl.u32 %v2196, 7
      %v2198 = vsub.s32 %v2195, %v2197
      %v2199 = vrot.slane %v2185, %v2198
      %v2200 = vcombine.low %v2192, %v2199
      %v2201 = vcombine.low %v1753, %v1752
      %v2202 = vcombine.low %v1761, %v1769
      %v2204 = vunpack.c.l.s4 1983009808
      %v2205 = vunpack.c.0.s8 %v2204
      %v2206 = vlaneseq
      %v2207 = vshrl.u32 %v2206, 7
      %v2208 = vsub.s32 %v2205, %v2207
      %v2209 = vrot.slane %v2201, %v2208
      %v2211 = vunpack.c.l.s4 1983009808
      %v2212 = vunpack.c.0.s8 %v2211
      %v2213 = vlaneseq
      %v2214 = vshrl.u32 %v2213, 7
      %v2215 = vsub.s32 %v2212, %v2214
      %v2216 = vrot.slane %v2202, %v2215
      %v2217 = vcombine.low %v2209, %v2216
      %v2218 = vcombine.low %v1768, %v1770
      %v2219 = vcombine.low %v1778, %v1786
      %v2221 = vunpack.c.l.s4 1983009808
      %v2222 = vunpack.c.0.s8 %v2221
      %v2223 = vlaneseq
      %v2224 = vshrl.u32 %v2223, 7
      %v2225 = vsub.s32 %v2222, %v2224
      %v2226 = vrot.slane %v2218, %v2225
      %v2228 = vunpack.c.l.s4 1983009808
      %v2229 = vunpack.c.0.s8 %v2228
      %v2230 = vlaneseq
      %v2231 = vshrl.u32 %v2230, 7
      %v2232 = vsub.s32 %v2229, %v2231
      %v2233 = vrot.slane %v2219, %v2232
      %v2234 = vcombine.low %v2226, %v2233
      %v2235 = vcombine.low %v1785, %v1794
      %v2236 = vcombine.low %v1802, %v1801
      %v2238 = vunpack.c.l.s4 1983009808
      %v2239 = vunpack.c.0.s8 %v2238
      %v2240 = vlaneseq
      %v2241 = vshrl.u32 %v2240, 7
      %v2242 = vsub.s32 %v2239, %v2241
      %v2243 = vrot.slane %v2235, %v2242
      %v2245 = vunpack.c.l.s4 1983009808
      %v2246 = vunpack.c.0.s8 %v2245
      %v2247 = vlaneseq
      %v2248 = vshrl.u32 %v2247, 7
      %v2249 = vsub.s32 %v2246, %v2248
      %v2250 = vrot.slane %v2236, %v2249
      %v2251 = vcombine.low %v2243, %v2250
      %v2252 = vcombine.low %v1803, %v1811
      %v2253 = vcombine.low %v1819, %v1818
      %v2255 = vunpack.c.l.s4 1983009808
      %v2256 = vunpack.c.0.s8 %v2255
      %v2257 = vlaneseq
      %v2258 = vshrl.u32 %v2257, 7
      %v2259 = vsub.s32 %v2256, %v2258
      %v2260 = vrot.slane %v2252, %v2259
      %v2262 = vunpack.c.l.s4 1983009808
      %v2263 = vunpack.c.0.s8 %v2262
      %v2264 = vlaneseq
      %v2265 = vshrl.u32 %v2264, 7
      %v2266 = vsub.s32 %v2263, %v2265
      %v2267 = vrot.slane %v2253, %v2266
      %v2268 = vcombine.low %v2260, %v2267
      %v2269 = vcombine.low %v1827, %v1835
      %v2270 = vcombine.low %v1834, %v1836
      %v2272 = vunpack.c.l.s4 1983009808
      %v2273 = vunpack.c.0.s8 %v2272
      %v2274 = vlaneseq
      %v2275 = vshrl.u32 %v2274, 7
      %v2276 = vsub.s32 %v2273, %v2275
      %v2277 = vrot.slane %v2269, %v2276
      %v2279 = vunpack.c.l.s4 1983009808
      %v2280 = vunpack.c.0.s8 %v2279
      %v2281 = vlaneseq
      %v2282 = vshrl.u32 %v2281, 7
      %v2283 = vsub.s32 %v2280, %v2282
      %v2284 = vrot.slane %v2270, %v2283
      %v2285 = vcombine.low %v2277, %v2284
      %v2286 = vcombine.low %v1844, %v1852
      %v2287 = vcombine.low %v1851, %v1860
      %v2289 = vunpack.c.l.s4 1983009808
      %v2290 = vunpack.c.0.s8 %v2289
      %v2291 = vlaneseq
      %v2292 = vshrl.u32 %v2291, 7
      %v2293 = vsub.s32 %v2290, %v2292
      %v2294 = vrot.slane %v2286, %v2293
      %v2296 = vunpack.c.l.s4 1983009808
      %v2297 = vunpack.c.0.s8 %v2296
      %v2298 = vlaneseq
      %v2299 = vshrl.u32 %v2298, 7
      %v2300 = vsub.s32 %v2297, %v2299
      %v2301 = vrot.slane %v2287, %v2300
      %v2302 = vcombine.low %v2294, %v2301
      %v2303 = vcombine.low %v1868, %v1867
      %v2304 = vcombine.low %v1869, %v1877
      %v2306 = vunpack.c.l.s4 1983009808
      %v2307 = vunpack.c.0.s8 %v2306
      %v2308 = vlaneseq
      %v2309 = vshrl.u32 %v2308, 7
      %v2310 = vsub.s32 %v2307, %v2309
      %v2311 = vrot.slane %v2303, %v2310
      %v2313 = vunpack.c.l.s4 1983009808
      %v2314 = vunpack.c.0.s8 %v2313
      %v2315 = vlaneseq
      %v2316 = vshrl.u32 %v2315, 7
      %v2317 = vsub.s32 %v2314, %v2316
      %v2318 = vrot.slane %v2304, %v2317
      %v2319 = vcombine.low %v2311, %v2318
      %v2320 = vcombine.low %v1885, %v1884
      %v2321 = vcombine.low %v1893, %v1901
      %v2323 = vunpack.c.l.s4 1983009808
      %v2324 = vunpack.c.0.s8 %v2323
      %v2325 = vlaneseq
      %v2326 = vshrl.u32 %v2325, 7
      %v2327 = vsub.s32 %v2324, %v2326
      %v2328 = vrot.slane %v2320, %v2327
      %v2330 = vunpack.c.l.s4 1983009808
      %v2331 = vunpack.c.0.s8 %v2330
      %v2332 = vlaneseq
      %v2333 = vshrl.u32 %v2332, 7
      %v2334 = vsub.s32 %v2331, %v2333
      %v2335 = vrot.slane %v2321, %v2334
      %v2336 = vcombine.low %v2328, %v2335
      %v2337 = vcombine.low %v1900, %v1902
      %v2338 = vcombine.low %v1910, %v1918
      %v2340 = vunpack.c.l.s4 1983009808
      %v2341 = vunpack.c.0.s8 %v2340
      %v2342 = vlaneseq
      %v2343 = vshrl.u32 %v2342, 7
      %v2344 = vsub.s32 %v2341, %v2343
      %v2345 = vrot.slane %v2337, %v2344
      %v2347 = vunpack.c.l.s4 1983009808
      %v2348 = vunpack.c.0.s8 %v2347
      %v2349 = vlaneseq
      %v2350 = vshrl.u32 %v2349, 7
      %v2351 = vsub.s32 %v2348, %v2350
      %v2352 = vrot.slane %v2338, %v2351
      %v2353 = vcombine.low %v2345, %v2352
      %v2354 = vcombine.low %v1917, %v1926
      %v2355 = vcombine.low %v1934, %v1933
      %v2357 = vunpack.c.l.s4 1983009808
      %v2358 = vunpack.c.0.s8 %v2357
      %v2359 = vlaneseq
      %v2360 = vshrl.u32 %v2359, 7
      %v2361 = vsub.s32 %v2358, %v2360
      %v2362 = vrot.slane %v2354, %v2361
      %v2364 = vunpack.c.l.s4 1983009808
      %v2365 = vunpack.c.0.s8 %v2364
      %v2366 = vlaneseq
      %v2367 = vshrl.u32 %v2366, 7
      %v2368 = vsub.s32 %v2365, %v2367
      %v2369 = vrot.slane %v2355, %v2368
      %v2370 = vcombine.low %v2362, %v2369
      %v2371 = vcombine.low %v1935, %v1943
      %v2372 = vcombine.low %v1951, %v1950
      %v2374 = vunpack.c.l.s4 1983009808
      %v2375 = vunpack.c.0.s8 %v2374
      %v2376 = vlaneseq
      %v2377 = vshrl.u32 %v2376, 7
      %v2378 = vsub.s32 %v2375, %v2377
      %v2379 = vrot.slane %v2371, %v2378
      %v2381 = vunpack.c.l.s4 1983009808
      %v2382 = vunpack.c.0.s8 %v2381
      %v2383 = vlaneseq
      %v2384 = vshrl.u32 %v2383, 7
      %v2385 = vsub.s32 %v2382, %v2384
      %v2386 = vrot.slane %v2372, %v2385
      %v2387 = vcombine.low %v2379, %v2386
      %v2388 = vcombine.low %v1959, %v1967
      %v2389 = vcombine.low %v1966, %v1968
      %v2391 = vunpack.c.l.s4 1983009808
      %v2392 = vunpack.c.0.s8 %v2391
      %v2393 = vlaneseq
      %v2394 = vshrl.u32 %v2393, 7
      %v2395 = vsub.s32 %v2392, %v2394
      %v2396 = vrot.slane %v2388, %v2395
      %v2398 = vunpack.c.l.s4 1983009808
      %v2399 = vunpack.c.0.s8 %v2398
      %v2400 = vlaneseq
      %v2401 = vshrl.u32 %v2400, 7
      %v2402 = vsub.s32 %v2399, %v2401
      %v2403 = vrot.slane %v2389, %v2402
      %v2404 = vcombine.low %v2396, %v2403
      %v2405 = vcombine.low %v1976, %v1984
      %v2406 = vcombine.low %v1983, %v1992
      %v2408 = vunpack.c.l.s4 1983009808
      %v2409 = vunpack.c.0.s8 %v2408
      %v2410 = vlaneseq
      %v2411 = vshrl.u32 %v2410, 7
      %v2412 = vsub.s32 %v2409, %v2411
      %v2413 = vrot.slane %v2405, %v2412
      %v2415 = vunpack.c.l.s4 1983009808
      %v2416 = vunpack.c.0.s8 %v2415
      %v2417 = vlaneseq
      %v2418 = vshrl.u32 %v2417, 7
      %v2419 = vsub.s32 %v2416, %v2418
      %v2420 = vrot.slane %v2406, %v2419
      %v2421 = vcombine.low %v2413, %v2420
      %v2422 = vcombine.low %v2000, %v1999
      %v2423 = vcombine.low %v2001, %v2009
      %v2425 = vunpack.c.l.s4 1983009808
      %v2426 = vunpack.c.0.s8 %v2425
      %v2427 = vlaneseq
      %v2428 = vshrl.u32 %v2427, 7
      %v2429 = vsub.s32 %v2426, %v2428
      %v2430 = vrot.slane %v2422, %v2429
      %v2432 = vunpack.c.l.s4 1983009808
      %v2433 = vunpack.c.0.s8 %v2432
      %v2434 = vlaneseq
      %v2435 = vshrl.u32 %v2434, 7
      %v2436 = vsub.s32 %v2433, %v2435
      %v2437 = vrot.slane %v2423, %v2436
      %v2438 = vcombine.low %v2430, %v2437
      %v2439 = vcombine.low %v2017, %v2016
      %v2440 = vcombine.low %v2025, %v2033
      %v2442 = vunpack.c.l.s4 1983009808
      %v2443 = vunpack.c.0.s8 %v2442
      %v2444 = vlaneseq
      %v2445 = vshrl.u32 %v2444, 7
      %v2446 = vsub.s32 %v2443, %v2445
      %v2447 = vrot.slane %v2439, %v2446
      %v2449 = vunpack.c.l.s4 1983009808
      %v2450 = vunpack.c.0.s8 %v2449
      %v2451 = vlaneseq
      %v2452 = vshrl.u32 %v2451, 7
      %v2453 = vsub.s32 %v2450, %v2452
      %v2454 = vrot.slane %v2440, %v2453
      %v2455 = vcombine.low %v2447, %v2454
      %v2456 = vcombine.low %v2032, %v2034
      %v2457 = vcombine.low %v2042, %v2050
      %v2459 = vunpack.c.l.s4 1983009808
      %v2460 = vunpack.c.0.s8 %v2459
      %v2461 = vlaneseq
      %v2462 = vshrl.u32 %v2461, 7
      %v2463 = vsub.s32 %v2460, %v2462
      %v2464 = vrot.slane %v2456, %v2463
      %v2466 = vunpack.c.l.s4 1983009808
      %v2467 = vunpack.c.0.s8 %v2466
      %v2468 = vlaneseq
      %v2469 = vshrl.u32 %v2468, 7
      %v2470 = vsub.s32 %v2467, %v2469
      %v2471 = vrot.slane %v2457, %v2470
      %v2472 = vcombine.low %v2464, %v2471
      %v2473 = vcombine.low %v2049, %v2058
      %v2474 = vcombine.low %v2066, %v2065
      %v2476 = vunpack.c.l.s4 1983009808
      %v2477 = vunpack.c.0.s8 %v2476
      %v2478 = vlaneseq
      %v2479 = vshrl.u32 %v2478, 7
      %v2480 = vsub.s32 %v2477, %v2479
      %v2481 = vrot.slane %v2473, %v2480
      %v2483 = vunpack.c.l.s4 1983009808
      %v2484 = vunpack.c.0.s8 %v2483
      %v2485 = vlaneseq
      %v2486 = vshrl.u32 %v2485, 7
      %v2487 = vsub.s32 %v2484, %v2486
      %v2488 = vrot.slane %v2474, %v2487
      %v2489 = vcombine.low %v2481, %v2488
      %v2490 = vcombine.low %v2067, %v2075
      %v2491 = vcombine.low %v2083, %v2082
      %v2493 = vunpack.c.l.s4 1983009808
      %v2494 = vunpack.c.0.s8 %v2493
      %v2495 = vlaneseq
      %v2496 = vshrl.u32 %v2495, 7
      %v2497 = vsub.s32 %v2494, %v2496
      %v2498 = vrot.slane %v2490, %v2497
      %v2500 = vunpack.c.l.s4 1983009808
      %v2501 = vunpack.c.0.s8 %v2500
      %v2502 = vlaneseq
      %v2503 = vshrl.u32 %v2502, 7
      %v2504 = vsub.s32 %v2501, %v2503
      %v2505 = vrot.slane %v2491, %v2504
      %v2506 = vcombine.low %v2498, %v2505
      %v2507 = vcombine.low %v2091, %v2099
      %v2508 = vcombine.low %v2098, %v2100
      %v2510 = vunpack.c.l.s4 1983009808
      %v2511 = vunpack.c.0.s8 %v2510
      %v2512 = vlaneseq
      %v2513 = vshrl.u32 %v2512, 7
      %v2514 = vsub.s32 %v2511, %v2513
      %v2515 = vrot.slane %v2507, %v2514
      %v2517 = vunpack.c.l.s4 1983009808
      %v2518 = vunpack.c.0.s8 %v2517
      %v2519 = vlaneseq
      %v2520 = vshrl.u32 %v2519, 7
      %v2521 = vsub.s32 %v2518, %v2520
      %v2522 = vrot.slane %v2508, %v2521
      %v2523 = vcombine.low %v2515, %v2522
      %v2524 = vcombine.low %v2108, %v2116
      %v2525 = vcombine.low %v2115, %v2124
      %v2527 = vunpack.c.l.s4 1983009808
      %v2528 = vunpack.c.0.s8 %v2527
      %v2529 = vlaneseq
      %v2530 = vshrl.u32 %v2529, 7
      %v2531 = vsub.s32 %v2528, %v2530
      %v2532 = vrot.slane %v2524, %v2531
      %v2534 = vunpack.c.l.s4 1983009808
      %v2535 = vunpack.c.0.s8 %v2534
      %v2536 = vlaneseq
      %v2537 = vshrl.u32 %v2536, 7
      %v2538 = vsub.s32 %v2535, %v2537
      %v2539 = vrot.slane %v2525, %v2538
      %v2540 = vcombine.low %v2532, %v2539
      %v2541 = vcombine.low %v2132, %v2131
      %v2542 = vcombine.low %v2133, %v2141
      %v2544 = vunpack.c.l.s4 1983009808
      %v2545 = vunpack.c.0.s8 %v2544
      %v2546 = vlaneseq
      %v2547 = vshrl.u32 %v2546, 7
      %v2548 = vsub.s32 %v2545, %v2547
      %v2549 = vrot.slane %v2541, %v2548
      %v2551 = vunpack.c.l.s4 1983009808
      %v2552 = vunpack.c.0.s8 %v2551
      %v2553 = vlaneseq
      %v2554 = vshrl.u32 %v2553, 7
      %v2555 = vsub.s32 %v2552, %v2554
      %v2556 = vrot.slane %v2542, %v2555
      %v2557 = vcombine.low %v2549, %v2556
      %v2558 = vcombine.low %v2149, %v2148
      %v2560 = vunpack.c.l.s4 1983009808
      %v2561 = vunpack.c.0.s8 %v2560
      %v2562 = vlaneseq
      %v2563 = vshrl.u32 %v2562, 7
      %v2564 = vsub.s32 %v2561, %v2563
      %v2565 = vrot.slane %v2558, %v2564
      %v2591 = vpack.c.bf16 %v2183, %v2166
      %v2592 = vpack.c.bf16 %v2217, %v2200
      %v2593 = vpack.c.bf16 %v2251, %v2234
      %v2594 = vpack.c.bf16 %v2285, %v2268
      %v2595 = vpack.c.bf16 %v2319, %v2302
      %v2596 = vpack.c.bf16 %v2353, %v2336
      %v2597 = vpack.c.bf16 %v2387, %v2370
      %v2598 = vpack.c.bf16 %v2421, %v2404
      %v2599 = vpack.c.bf16 %v2455, %v2438
      %v2600 = vpack.c.bf16 %v2489, %v2472
      %v2601 = vpack.c.bf16 %v2523, %v2506
      %v2602 = vpack.c.bf16 %v2557, %v2540
      %v2603 = vpack.c.bf16 %v2565, %v2565
      %v2604 = vld [vmem:[%s1] sm:$0xf]
      %v2605 = vld [vmem:[%s1 + $0x4] sm:$0xf]
      %v2606 = vld [vmem:[%s1 + $0x8] sm:$0xf]
      %v2607 = vld [vmem:[%s1 + $0xc] sm:$0xf]
      %v2608 = vld [vmem:[%s1 + $0x10] sm:$0xf]
      %v2609 = vld [vmem:[%s1 + $0x14] sm:$0x7]
      %v2616 = vunpack.c.l.b16 %v2604
      %v2617 = vunpack.c.l.b16 %v2605
      %v2618 = vunpack.c.l.b16 %v2606
      %v2619 = vunpack.c.l.b16 %v2607
      %v2620 = vunpack.c.l.b16 %v2608
      %v2621 = vunpack.c.l.b16 %v2609
      %v2622 = vpack.c.b16 %v2617, %v2616
      %v2623 = vpack.c.b16 %v2619, %v2618
      %v2624 = vpack.c.b16 %v2621, %v2620
      %vm2627 = vcmask 367616
      %v2629 = vsel %vm2627, %v2591, 0
      %v2632 = vsel %vm2627, %v2592, 0
      %v2635 = vsel %vm2627, %v2593, 0
      %v2638 = vsel %vm2627, %v2594, 0
      %v2641 = vsel %vm2627, %v2595, 0
      %v2644 = vsel %vm2627, %v2596, 0
      %v2647 = vsel %vm2627, %v2597, 0
      %v2650 = vsel %vm2627, %v2598, 0
      %v2653 = vsel %vm2627, %v2599, 0
      %v2656 = vsel %vm2627, %v2600, 0
      %v2659 = vsel %vm2627, %v2601, 0
      %v2662 = vsel %vm2627, %v2602, 0
      %v2665 = vsel %vm2627, %v2603, 0
      %vm2667 = vcmask 1045504
      %vm2668 = vcmask 1046528
      %v2669 = vsel %vm2667, 4294967295, 65535
      %v2670 = vsel %vm2668, %v2669, 0
      %v2672 = vand.u32 %v2624, %v2670
      %2674 = vmatprep.subr.bf16.mxu0 0
      %2675 = vmatpush1.bf16.msra.mxu0 0
      %2676 = vmatprep.subr.bf16.mxu0 0
      %2677 = vmatpush1.bf16.msra.mxu0 0
      %2678 = vmatprep.subr.bf16.mxu0 0
      %2679 = vmatpush1.bf16.msra.mxu0 0
      %2680 = vmatprep.subr.bf16.mxu0 0
      %2681 = vmatpush1.bf16.msra.mxu0 0
      %2682 = vmatprep.subr.bf16.mxu0 0
      %2683 = vmatpush1.bf16.msra.mxu0 0
      %2684 = vmatprep.subr.bf16.mxu0 0
      %2685 = vmatpush1.bf16.msra.mxu0 %v2672
      %2686 = vmatprep.subr.bf16.mxu0 0
      %2687 = vmatpush1.bf16.msra.mxu0 %v2623
      %2688 = vmatprep.subr.bf16.mxu0 0
      %2689 = vmatpush1.bf16.msra.mxu0 %v2622
      %2690 = vmatprep.subr.bf16.mxu0 0
      %2691 = vmatpush2.bf16.msra.mxu0 0
      %2692 = vmatprep.subr.bf16.mxu0 0
      %2693 = vmatpush2.bf16.msra.mxu0 0
      %2694 = vmatprep.subr.bf16.mxu0 0
      %2695 = vmatpush2.bf16.msra.mxu0 0
      %2696 = vmatprep.subr.bf16.mxu0 0
      %2697 = vmatpush2.bf16.msra.mxu0 0
      %2698 = vmatprep.subr.bf16.mxu0 0
      %2699 = vmatpush2.bf16.msra.mxu0 0
      %2700 = vmatprep.subr.bf16.mxu0 0
      %2701 = vmatpush2.bf16.msra.mxu0 0
      %2702 = vmatprep.subr.bf16.mxu0 0
      %2703 = vmatpush2.bf16.msra.mxu0 0
      %2704 = vmatprep.subr.bf16.mxu0 0
      %2705 = vmatpush2.bf16.msra.mxu0 0
      %2706 = vmatprep.mubr.bf16.mxu0 0
      %2707 = vmatmul.mubr.bf16.gmra.mxu0 %v2629
      %v2708 = vpop.f32.mrf.mxu0
      %v2709 = vadd.f32 0.0, %v2708
      %v2710 = vpop.f32.mrf.mxu0
      %v2711 = vpop.f32.mrf.mxu0
      %v2712 = vadd.f32 0.0, %v2711
      %v2713 = vpop.f32.mrf.mxu0
      %2714 = vmatprep.mubr.bf16.mxu0 0
      %2715 = vmatmul.mubr.bf16.gmra.mxu0 %v2632
      %v2716 = vpop.f32.mrf.mxu0
      %v2717 = vadd.f32 0.0, %v2716
      %v2718 = vpop.f32.mrf.mxu0
      %v2719 = vpop.f32.mrf.mxu0
      %v2720 = vadd.f32 0.0, %v2719
      %v2721 = vpop.f32.mrf.mxu0
      %2722 = vmatprep.mubr.bf16.mxu0 0
      %2723 = vmatmul.mubr.bf16.gmra.mxu0 %v2635
      %v2724 = vpop.f32.mrf.mxu0
      %v2725 = vadd.f32 0.0, %v2724
      %v2726 = vpop.f32.mrf.mxu0
      %v2727 = vpop.f32.mrf.mxu0
      %v2728 = vadd.f32 0.0, %v2727
      %v2729 = vpop.f32.mrf.mxu0
      %2730 = vmatprep.mubr.bf16.mxu0 0
      %2731 = vmatmul.mubr.bf16.gmra.mxu0 %v2638
      %v2732 = vpop.f32.mrf.mxu0
      %v2733 = vadd.f32 0.0, %v2732
      %v2734 = vpop.f32.mrf.mxu0
      %v2735 = vpop.f32.mrf.mxu0
      %v2736 = vadd.f32 0.0, %v2735
      %v2737 = vpop.f32.mrf.mxu0
      %2738 = vmatprep.mubr.bf16.mxu0 0
      %2739 = vmatmul.mubr.bf16.gmra.mxu0 %v2641
      %v2740 = vpop.f32.mrf.mxu0
      %v2741 = vadd.f32 0.0, %v2740
      %v2742 = vpop.f32.mrf.mxu0
      %v2743 = vpop.f32.mrf.mxu0
      %v2744 = vadd.f32 0.0, %v2743
      %v2745 = vpop.f32.mrf.mxu0
      %2746 = vmatprep.mubr.bf16.mxu0 0
      %2747 = vmatmul.mubr.bf16.gmra.mxu0 %v2644
      %v2748 = vpop.f32.mrf.mxu0
      %v2749 = vadd.f32 0.0, %v2748
      %v2750 = vpop.f32.mrf.mxu0
      %v2751 = vpop.f32.mrf.mxu0
      %v2752 = vadd.f32 0.0, %v2751
      %v2753 = vpop.f32.mrf.mxu0
      %2754 = vmatprep.mubr.bf16.mxu0 0
      %2755 = vmatmul.mubr.bf16.gmra.mxu0 %v2647
      %v2756 = vpop.f32.mrf.mxu0
      %v2757 = vadd.f32 0.0, %v2756
      %v2758 = vpop.f32.mrf.mxu0
      %v2759 = vpop.f32.mrf.mxu0
      %v2760 = vadd.f32 0.0, %v2759
      %v2761 = vpop.f32.mrf.mxu0
      %2762 = vmatprep.mubr.bf16.mxu0 0
      %2763 = vmatmul.mubr.bf16.gmra.mxu0 %v2650
      %v2764 = vpop.f32.mrf.mxu0
      %v2765 = vadd.f32 0.0, %v2764
      %v2766 = vpop.f32.mrf.mxu0
      %v2767 = vpop.f32.mrf.mxu0
      %v2768 = vadd.f32 0.0, %v2767
      %v2769 = vpop.f32.mrf.mxu0
      %2770 = vmatprep.mubr.bf16.mxu0 0
      %2771 = vmatmul.mubr.bf16.gmra.mxu0 %v2653
      %v2772 = vpop.f32.mrf.mxu0
      %v2773 = vadd.f32 0.0, %v2772
      %v2774 = vpop.f32.mrf.mxu0
      %v2775 = vpop.f32.mrf.mxu0
      %v2776 = vadd.f32 0.0, %v2775
      %v2777 = vpop.f32.mrf.mxu0
      %2778 = vmatprep.mubr.bf16.mxu0 0
      %2779 = vmatmul.mubr.bf16.gmra.mxu0 %v2656
      %v2780 = vpop.f32.mrf.mxu0
      %v2781 = vadd.f32 0.0, %v2780
      %v2782 = vpop.f32.mrf.mxu0
      %v2783 = vpop.f32.mrf.mxu0
      %v2784 = vadd.f32 0.0, %v2783
      %v2785 = vpop.f32.mrf.mxu0
      %2786 = vmatprep.mubr.bf16.mxu0 0
      %2787 = vmatmul.mubr.bf16.gmra.mxu0 %v2659
      %v2788 = vpop.f32.mrf.mxu0
      %v2789 = vadd.f32 0.0, %v2788
      %v2790 = vpop.f32.mrf.mxu0
      %v2791 = vpop.f32.mrf.mxu0
      %v2792 = vadd.f32 0.0, %v2791
      %v2793 = vpop.f32.mrf.mxu0
      %2794 = vmatprep.mubr.bf16.mxu0 0
      %2795 = vmatmul.mubr.bf16.gmra.mxu0 %v2662
      %v2796 = vpop.f32.mrf.mxu0
      %v2797 = vadd.f32 0.0, %v2796
      %v2798 = vpop.f32.mrf.mxu0
      %v2799 = vpop.f32.mrf.mxu0
      %v2800 = vadd.f32 0.0, %v2799
      %v2801 = vpop.f32.mrf.mxu0
      %2802 = vmatprep.mubr.bf16.mxu0 0
      %2803 = vmatmul.mubr.bf16.gmra.mxu0 %v2665
      %v2804 = vpop.f32.mrf.mxu0
      %v2805 = vadd.f32 0.0, %v2804
      %v2806 = vpop.f32.mrf.mxu0
      %v2807 = vpop.f32.mrf.mxu0
      %v2808 = vpop.f32.mrf.mxu0
      %2809 = vdwg.mxu0
      %v2810 = vlaneseq
      %v2811 = vand.u32 %v2810, 127
      %vm2812 = vcmp.lt.s32.totalorder %v2811, 8
      %v2813 = vsel %vm2812, 0.2, 1.0
      %vm2814 = vcmp.gt.f32.partialorder %v2709, 0.0
      %vm2815 = vcmp.gt.f32.partialorder %v2712, 0.0
      %vm2816 = vcmp.gt.f32.partialorder %v2717, 0.0
      %vm2817 = vcmp.gt.f32.partialorder %v2720, 0.0
      %vm2818 = vcmp.gt.f32.partialorder %v2725, 0.0
      %vm2819 = vcmp.gt.f32.partialorder %v2728, 0.0
      %vm2820 = vcmp.gt.f32.partialorder %v2733, 0.0
      %vm2821 = vcmp.gt.f32.partialorder %v2736, 0.0
      %vm2822 = vcmp.gt.f32.partialorder %v2741, 0.0
      %vm2823 = vcmp.gt.f32.partialorder %v2744, 0.0
      %vm2824 = vcmp.gt.f32.partialorder %v2749, 0.0
      %vm2825 = vcmp.gt.f32.partialorder %v2752, 0.0
      %vm2826 = vcmp.gt.f32.partialorder %v2757, 0.0
      %vm2827 = vcmp.gt.f32.partialorder %v2760, 0.0
      %vm2828 = vcmp.gt.f32.partialorder %v2765, 0.0
      %vm2829 = vcmp.gt.f32.partialorder %v2768, 0.0
      %vm2830 = vcmp.gt.f32.partialorder %v2773, 0.0
      %vm2831 = vcmp.gt.f32.partialorder %v2776, 0.0
      %vm2832 = vcmp.gt.f32.partialorder %v2781, 0.0
      %vm2833 = vcmp.gt.f32.partialorder %v2784, 0.0
      %vm2834 = vcmp.gt.f32.partialorder %v2789, 0.0
      %vm2835 = vcmp.gt.f32.partialorder %v2792, 0.0
      %vm2836 = vcmp.gt.f32.partialorder %v2797, 0.0
      %vm2837 = vcmp.gt.f32.partialorder %v2800, 0.0
      %vm2838 = vcmp.gt.f32.partialorder %v2805, 0.0
      %v2839 = vmul.f32 %v2709, %v2813
      %v2840 = vmul.f32 %v2712, %v2813
      %v2841 = vmul.f32 %v2717, %v2813
      %v2842 = vmul.f32 %v2720, %v2813
      %v2843 = vmul.f32 %v2725, %v2813
      %v2844 = vmul.f32 %v2728, %v2813
      %v2845 = vmul.f32 %v2733, %v2813
      %v2846 = vmul.f32 %v2736, %v2813
      %v2847 = vmul.f32 %v2741, %v2813
      %v2848 = vmul.f32 %v2744, %v2813
      %v2849 = vmul.f32 %v2749, %v2813
      %v2850 = vmul.f32 %v2752, %v2813
      %v2851 = vmul.f32 %v2757, %v2813
      %v2852 = vmul.f32 %v2760, %v2813
      %v2853 = vmul.f32 %v2765, %v2813
      %v2854 = vmul.f32 %v2768, %v2813
      %v2855 = vmul.f32 %v2773, %v2813
      %v2856 = vmul.f32 %v2776, %v2813
      %v2857 = vmul.f32 %v2781, %v2813
      %v2858 = vmul.f32 %v2784, %v2813
      %v2859 = vmul.f32 %v2789, %v2813
      %v2860 = vmul.f32 %v2792, %v2813
      %v2861 = vmul.f32 %v2797, %v2813
      %v2862 = vmul.f32 %v2800, %v2813
      %v2863 = vmul.f32 %v2805, %v2813
      %v2864 = vsel %vm2814, %v2709, %v2839
      %v2865 = vsel %vm2815, %v2712, %v2840
      %v2866 = vsel %vm2816, %v2717, %v2841
      %v2867 = vsel %vm2817, %v2720, %v2842
      %v2868 = vsel %vm2818, %v2725, %v2843
      %v2869 = vsel %vm2819, %v2728, %v2844
      %v2870 = vsel %vm2820, %v2733, %v2845
      %v2871 = vsel %vm2821, %v2736, %v2846
      %v2872 = vsel %vm2822, %v2741, %v2847
      %v2873 = vsel %vm2823, %v2744, %v2848
      %v2874 = vsel %vm2824, %v2749, %v2849
      %v2875 = vsel %vm2825, %v2752, %v2850
      %v2876 = vsel %vm2826, %v2757, %v2851
      %v2877 = vsel %vm2827, %v2760, %v2852
      %v2878 = vsel %vm2828, %v2765, %v2853
      %v2879 = vsel %vm2829, %v2768, %v2854
      %v2880 = vsel %vm2830, %v2773, %v2855
      %v2881 = vsel %vm2831, %v2776, %v2856
      %v2882 = vsel %vm2832, %v2781, %v2857
      %v2883 = vsel %vm2833, %v2784, %v2858
      %v2884 = vsel %vm2834, %v2789, %v2859
      %v2885 = vsel %vm2835, %v2792, %v2860
      %v2886 = vsel %vm2836, %v2797, %v2861
      %v2887 = vsel %vm2837, %v2800, %v2862
      %v2888 = vsel %vm2838, %v2805, %v2863
      %v2889 = vld [vmem:[%s2] sm:$0xff]
      %v2890 = vld [vmem:[%s2 + $0x8] sm:$0xff]
      %v2891 = vld [vmem:[%s2 + $0x10] sm:$0xff]
      %v2892 = vld [vmem:[%s2 + $0x18] sm:$0xff]
      %v2893 = vld [vmem:[%s2 + $0x20] sm:$0xff]
      %v2894 = vld [vmem:[%s2 + $0x28] sm:$0xff]
      %v2895 = vld [vmem:[%s2 + $0x30] sm:$0xff]
      %v2896 = vld [vmem:[%s2 + $0x38] sm:$0xff]
      %v2897 = vld [vmem:[%s2 + $0x40] sm:$0xff]
      %v2898 = vld [vmem:[%s2 + $0x48] sm:$0xff]
      %v2899 = vld [vmem:[%s2 + $0x50] sm:$0xff]
      %v2900 = vld [vmem:[%s2 + $0x58] sm:$0xff]
      %v2901 = vld [vmem:[%s2 + $0x60] sm:$0x1]
      %v2902 = vld [vmem:[%s2 + $0x68] sm:$0x1]
      %vm2903 = vcmask 556032
      %v2905 = vsel %vm2903, %v2890, 0
      %v2908 = vsel %vm2903, %v2892, 0
      %v2911 = vsel %vm2903, %v2894, 0
      %v2914 = vsel %vm2903, %v2896, 0
      %v2917 = vsel %vm2903, %v2898, 0
      %v2920 = vsel %vm2903, %v2900, 0
      %v2923 = vsel %vm2903, %v2902, 0
      %vm2925 = vcmask 1043456
      %v2927 = vsel %vm2925, %v2888, 0
      %2929 = vmatprep.subr.mxu0 0.0
      %2930 = vmatpush1.msra.mxu0 %v2879
      %2931 = vmatprep.subr.mxu0 0.0
      %2932 = vmatpush1.msra.mxu0 %v2878
      %2933 = vmatprep.subr.mxu0 0.0
      %2934 = vmatpush1.msra.mxu0 %v2877
      %2935 = vmatprep.subr.mxu0 0.0
      %2936 = vmatpush1.msra.mxu0 %v2876
      %2937 = vmatprep.subr.mxu0 0.0
      %2938 = vmatpush1.msra.mxu0 %v2875
      %2939 = vmatprep.subr.mxu0 0.0
      %2940 = vmatpush1.msra.mxu0 %v2874
      %2941 = vmatprep.subr.mxu0 0.0
      %2942 = vmatpush1.msra.mxu0 %v2873
      %2943 = vmatprep.subr.mxu0 0.0
      %2944 = vmatpush1.msra.mxu0 %v2872
      %2945 = vmatprep.subr.mxu0 0.0
      %2946 = vmatpush1.msra.mxu0 %v2871
      %2947 = vmatprep.subr.mxu0 0.0
      %2948 = vmatpush1.msra.mxu0 %v2870
      %2949 = vmatprep.subr.mxu0 0.0
      %2950 = vmatpush1.msra.mxu0 %v2869
      %2951 = vmatprep.subr.mxu0 0.0
      %2952 = vmatpush1.msra.mxu0 %v2868
      %2953 = vmatprep.subr.mxu0 0.0
      %2954 = vmatpush1.msra.mxu0 %v2867
      %2955 = vmatprep.subr.mxu0 0.0
      %2956 = vmatpush1.msra.mxu0 %v2866
      %2957 = vmatprep.subr.mxu0 0.0
      %2958 = vmatpush1.msra.mxu0 %v2865
      %2959 = vmatprep.subr.mxu0 0.0
      %2960 = vmatpush1.msra.mxu0 %v2864
      %2961 = vmatprep.subr.mxu0 0.0
      %2962 = vmatpush2.msra.mxu0 0.0
      %2963 = vmatprep.subr.mxu0 0.0
      %2964 = vmatpush2.msra.mxu0 0.0
      %2965 = vmatprep.subr.mxu0 0.0
      %2966 = vmatpush2.msra.mxu0 0.0
      %2967 = vmatprep.subr.mxu0 0.0
      %2968 = vmatpush2.msra.mxu0 0.0
      %2969 = vmatprep.subr.mxu0 0.0
      %2970 = vmatpush2.msra.mxu0 0.0
      %2971 = vmatprep.subr.mxu0 0.0
      %2972 = vmatpush2.msra.mxu0 0.0
      %2973 = vmatprep.subr.mxu0 0.0
      %2974 = vmatpush2.msra.mxu0 0.0
      %2975 = vmatprep.subr.mxu0 0.0
      %2976 = vmatpush2.msra.mxu0 %v2927
      %2977 = vmatprep.subr.mxu0 0.0
      %2978 = vmatpush2.msra.mxu0 %v2887
      %2979 = vmatprep.subr.mxu0 0.0
      %2980 = vmatpush2.msra.mxu0 %v2886
      %2981 = vmatprep.subr.mxu0 0.0
      %2982 = vmatpush2.msra.mxu0 %v2885
      %2983 = vmatprep.subr.mxu0 0.0
      %2984 = vmatpush2.msra.mxu0 %v2884
      %2985 = vmatprep.subr.mxu0 0.0
      %2986 = vmatpush2.msra.mxu0 %v2883
      %2987 = vmatprep.subr.mxu0 0.0
      %2988 = vmatpush2.msra.mxu0 %v2882
      %2989 = vmatprep.subr.mxu0 0.0
      %2990 = vmatpush2.msra.mxu0 %v2881
      %2991 = vmatprep.subr.mxu0 0.0
      %2992 = vmatpush2.msra.mxu0 %v2880
      %2993 = vmatprep.mubr.f32.mxu0 %v2905
      %2994 = vmatmul.mubr.f32.gmra.mxu0 %v2889
      %v2995 = vpop.f32.mrf.mxu0
      %v2996 = vadd.f32 0.0, %v2995
      %v2997 = vpop.f32.mrf.mxu0
      %2998 = vmatprep.mubr.f32.mxu0 %v2908
      %2999 = vmatmul.mubr.f32.gmra.mxu0 %v2891
      %v3000 = vpop.f32.mrf.mxu0
      %v3001 = vadd.f32 0.0, %v3000
      %v3002 = vpop.f32.mrf.mxu0
      %3003 = vmatprep.mubr.f32.mxu0 %v2911
      %3004 = vmatmul.mubr.f32.gmra.mxu0 %v2893
      %v3005 = vpop.f32.mrf.mxu0
      %v3006 = vadd.f32 0.0, %v3005
      %v3007 = vpop.f32.mrf.mxu0
      %3008 = vmatprep.mubr.f32.mxu0 %v2914
      %3009 = vmatmul.mubr.f32.gmra.mxu0 %v2895
      %v3010 = vpop.f32.mrf.mxu0
      %v3011 = vadd.f32 0.0, %v3010
      %v3012 = vpop.f32.mrf.mxu0
      %3013 = vmatprep.mubr.f32.mxu0 %v2917
      %3014 = vmatmul.mubr.f32.gmra.mxu0 %v2897
      %v3015 = vpop.f32.mrf.mxu0
      %v3016 = vadd.f32 0.0, %v3015
      %v3017 = vpop.f32.mrf.mxu0
      %3018 = vmatprep.mubr.f32.mxu0 %v2920
      %3019 = vmatmul.mubr.f32.gmra.mxu0 %v2899
      %v3020 = vpop.f32.mrf.mxu0
      %v3021 = vadd.f32 0.0, %v3020
      %v3022 = vpop.f32.mrf.mxu0
      %3023 = vmatprep.mubr.f32.mxu0 %v2923
      %3024 = vmatmul.mubr.f32.gmra.mxu0 %v2901
      %v3025 = vpop.f32.mrf.mxu0
      %v3026 = vadd.f32 0.0, %v3025
      %v3027 = vpop.f32.mrf.mxu0
      %3028 = vdwg.mxu0
      %vm3029 = vcmask 64512
      %3030 = vst.msk [vmem:[%s205] sm:$0xff] %vm3029, %v2996
      %3031 = vst.msk [vmem:[%s205 + $0x8] sm:$0xff] %vm3029, %v3001
      %3032 = vst.msk [vmem:[%s205 + $0x10] sm:$0xff] %vm3029, %v3006
      %3033 = vst.msk [vmem:[%s205 + $0x18] sm:$0xff] %vm3029, %v3011
      %3034 = vst.msk [vmem:[%s205 + $0x20] sm:$0xff] %vm3029, %v3016
      %3035 = vst.msk [vmem:[%s205 + $0x28] sm:$0xff] %vm3029, %v3021
      %vm3036 = vcmask 57344
      %3037 = vst.msk [vmem:[%s205 + $0x30] sm:$0x1] %vm3036, %v3026
      %3045 = vrot.lane.b32.xlu0 %v2996, 120
      %v3046 = vpop.permute.xlu0 %3045
      %3047 = vrot.lane.b32.xlu0 %v3001, 120
      %v3048 = vpop.permute.xlu0 %3047
      %3049 = vrot.lane.b32.xlu0 %v3006, 120
      %v3050 = vpop.permute.xlu0 %3049
      %3051 = vrot.lane.b32.xlu0 %v3011, 120
      %v3052 = vpop.permute.xlu0 %3051
      %3053 = vrot.lane.b32.xlu0 %v3016, 120
      %v3054 = vpop.permute.xlu0 %3053
      %3055 = vrot.lane.b32.xlu0 %v3021, 120
      %v3056 = vpop.permute.xlu0 %3055
      %3057 = vrot.lane.b32.xlu0 %v3026, 120
      %v3058 = vpop.permute.xlu0 %3057
      %vm3066 = vcmask 7168
      %3067 = vst.msk [vmem:[%s210] sm:$0xff] %vm3066, %v3046
      %3068 = vst.msk [vmem:[%s210 + $0x8] sm:$0xff] %vm3066, %v3048
      %3069 = vst.msk [vmem:[%s210 + $0x10] sm:$0xff] %vm3066, %v3050
      %3070 = vst.msk [vmem:[%s210 + $0x18] sm:$0xff] %vm3066, %v3052
      %3071 = vst.msk [vmem:[%s210 + $0x20] sm:$0xff] %vm3066, %v3054
      %3072 = vst.msk [vmem:[%s210 + $0x28] sm:$0xff] %vm3066, %v3056
      %vm3073 = vcmask 0
      %3074 = vst.msk [vmem:[%s210 + $0x30] sm:$0x1] %vm3073, %v3058
      %p3075 = scmp.lt.s32.totalorder %s16, 1
      %s3076 = scalar_select %p3075, %s16, 1
      %s3077 = smul.addr %s3076, 7
      %s3078 = smul.addr %s3077, 8
      %s3079 = scalar_lea.vmem %s3, %s3078
      %p3080 = scmp.lt.s32.totalorder %s16, 1
      %s3081 = scalar_select %p3080, %s16, 1
      %s3082 = smul.addr %s3081, 7
      %s3083 = smul.addr %s3082, 8
      %s3084 = scalar_lea.vmem %s4, %s3083
      // Predicated region
      $region33: #{down_block_mnet_forward.1} parent=31 // pred_check
        %p3085 = pneg %p102
      $region34: #{down_block_mnet_forward.1} parent=31 // pred_check_branch
        %3087 = sbr.rel (%p3085) target = $region36
      $region35: #{down_block_mnet_forward.1} parent=31 // pred_region
        _
      $region36: #{down_block_mnet_forward.1} parent=31 // pred_fallthru
        _
      // Predicated region
      $region37: #{down_block_mnet_forward.1} parent=31 // pred_check
        %p3088 = pneg %p128
      $region38: #{down_block_mnet_forward.1} parent=31 // pred_check_branch
        %3090 = sbr.rel (%p3088) target = $region40
      $region39: #{down_block_mnet_forward.1} parent=31 // pred_region
        _
      $region40: #{down_block_mnet_forward.1} parent=31 // pred_fallthru
        _
    $region32: #{down_block_mnet_forward.1} parent=5 // pred_fallthru
      _
    %p3091 = scmp.le.s32.totalorder 2, %s11
    // Predicated region
    $region41: #{down_block_mnet_forward.1} parent=5 // pred_check
      %p3092 = pneg %p3091
    $region42: #{down_block_mnet_forward.1} parent=5 // pred_check_branch
      %3094 = sbr.rel (%p3092) target = $region44
    $region43: #{down_block_mnet_forward.1} parent=5 // pred_region
      %s3095 = ssub.s32 %s11, 2
      // Predicated region
      $region45: #{down_block_mnet_forward.1} parent=43 // pred_check
        %p3096 = pneg %p108
      $region46: #{down_block_mnet_forward.1} parent=43 // pred_check_branch
        %3098 = sbr.rel (%p3096) target = $region48
      $region47: #{down_block_mnet_forward.1} parent=43 // pred_region
        %p3099 = scmp.lt.s32.totalorder %s17, 1
        %s3100 = scalar_select %p3099, %s17, 1
        %s3101 = smul.addr %s3100, 7
        %s3102 = smul.addr %s3101, 8
        %s3103 = scalar_lea.vmem %s3, %s3102
      $region48: #{down_block_mnet_forward.1} parent=43 // pred_fallthru
        _
      // Predicated region
      $region49: #{down_block_mnet_forward.1} parent=43 // pred_check
        %p3104 = pneg %p134
      $region50: #{down_block_mnet_forward.1} parent=43 // pred_check_branch
        %3106 = sbr.rel (%p3104) target = $region52
      $region51: #{down_block_mnet_forward.1} parent=43 // pred_region
        %p3107 = scmp.lt.s32.totalorder %s17, 1
        %s3108 = scalar_select %p3107, %s17, 1
        %s3109 = smul.addr %s3108, 7
        %s3110 = smul.addr %s3109, 8
        %s3111 = scalar_lea.vmem %s4, %s3110
      $region52: #{down_block_mnet_forward.1} parent=43 // pred_fallthru
        _
    $region44: #{down_block_mnet_forward.1} parent=5 // pred_fallthru
      _
  $region6: #{down_block_mnet_forward.1} parent=0 // loop_footer
    %s15 = sadd.s32 1, %s11
  $region7: #{down_block_mnet_forward.1} parent=0 // loop_footer_branch
    %10 = sbr.rel target = $region3
  $region8: #{down_block_mnet_forward.1} parent=0 // loop_exit
    _

</llo_original>
